<compile_context>
chip_gen: v7x
topology: tpu7x:2x2x1
jax: 0.10.0
libtpu: 0.0.40
codegen_flags: <defaults>
</compile_context>

<pallas_src>
import math
import functools

import jax
import jax.numpy as jnp
from jax.experimental import pallas as pl
from jax.experimental.pallas import tpu as pltpu


# ----------------------------------------------------------------------------
# Kernel: one (batch-group, head-block) pair per grid step.
#   q/k/v projection (per-head-block weight slice) + RoPE + softmax attention +
#   head-block slice of the fused (double) o_proj, accumulated over head blocks.
# ----------------------------------------------------------------------------
def _llama_attn_kernel(x_ref, wq_ref, wk_ref, wv_ref, wo2_ref, cos_ref, sin_ref,
                       o_ref, acc_ref, *, head_dim, heads_per_block, batch_block,
                       attn_dtype):
    hblk = pl.program_id(1)
    HD = head_dim
    half = HD // 2

    wq = wq_ref[...]       # (H, hpb*HD)  pre-transposed, softmax scale folded in
    wk = wk_ref[...]       # (H, hpb*HD)
    wv = wv_ref[...]       # (H, hpb*HD)
    wo2 = wo2_ref[...]     # (hpb*HD, H)  fused o_proj (applied twice in the ref)
    cos = cos_ref[...]     # (S, HD) f32
    sin = sin_ref[...]     # (S, HD) f32, rotate_half sign folded in

    for bt in range(batch_block):
        xb = x_ref[bt]     # (S, H), already in the weight dtype (pre-cast)

        # Projections: MXU matmuls, f32 accumulation. With heads_per_block=2 the
        # output width is 256 (full v6e/v7x MXU tile).
        q = jnp.dot(xb, wq, preferred_element_type=jnp.float32)   # (S, hpb*HD)
        k = jnp.dot(xb, wk, preferred_element_type=jnp.float32)
        v = jnp.dot(xb, wv, preferred_element_type=jnp.float32)

        ctx_heads = []
        for i in range(heads_per_block):
            c0 = i * HD
            qh = q[:, c0:c0 + HD]
            kh = k[:, c0:c0 + HD]
            vh = v[:, c0:c0 + HD]

            # RoPE: x*cos + rotate_half(x)*sin.  rotate_half == roll(x, HD//2)
            # with a [-1]*half ++ [+1]*half sign already folded into `sin`, so
            # this is one XLU roll + VPU fma per tensor (f32 -> v5e-safe).
            qh = qh * cos + pltpu.roll(qh, shift=half, axis=1) * sin
            kh = kh * cos + pltpu.roll(kh, shift=half, axis=1) * sin

            # QK^T contracting the last dims (no materialized k.T); bf16
            # operands, f32 accumulation.  The 1/sqrt(HD) scale is already in q.
            s = jax.lax.dot_general(
                qh.astype(attn_dtype), kh.astype(attn_dtype),
                (((1,), (1,)), ((), ())),
                preferred_element_type=jnp.float32)                # (S, S)
            s = s - jnp.max(s, axis=-1, keepdims=True)
            e = jnp.exp(s)
            p = e * pl.reciprocal(jnp.sum(e, axis=-1, keepdims=True), approx=True)

            ctx_heads.append(
                jnp.dot(p.astype(attn_dtype), vh.astype(attn_dtype),
                        preferred_element_type=jnp.float32))       # (S, HD)

        # Stack head contexts -> single (S, hpb*HD) @ (hpb*HD, H) matmul
        # (256-deep contraction on the MXU when hpb=2).
        ctx = ctx_heads[0] if heads_per_block == 1 else jnp.concatenate(ctx_heads, axis=1)
        contrib = jnp.dot(ctx.astype(wo2.dtype), wo2,
                          preferred_element_type=jnp.float32)      # (S, H)

        # Direct write on the first head block (no zero-fill), accumulate after.
        @pl.when(hblk == 0)
        def _init(contrib=contrib, bt=bt):
            acc_ref[bt] = contrib

        @pl.when(hblk > 0)
        def _acc(contrib=contrib, bt=bt):
            acc_ref[bt] += contrib

    @pl.when(hblk == pl.num_programs(1) - 1)
    def _out():
        o_ref[...] = acc_ref[...].astype(o_ref.dtype)


# ----------------------------------------------------------------------------
# One-time weight/RoPE-table preprocessing (hoist out of the forward call).
# ----------------------------------------------------------------------------
def prepare_llama_attention_params(wq, wk, wv, wo, cos, sin, *, num_heads, head_dim,
                                   heads_per_block=2, param_dtype=jnp.bfloat16):
    H = num_heads * head_dim
    hpb = heads_per_block if (heads_per_block >= 1 and num_heads % heads_per_block == 0) else 1
    nhb = num_heads // hpb

    # PyTorch Linear stores (out, in); pre-transpose so the kernel does x @ W_t.
    # Fold the 1/sqrt(head_dim) softmax scale into Wq (RoPE is linear in q -> exact).
    scale = jnp.float32(1.0 / math.sqrt(head_dim))
    wq_t = wq.T * scale
    wk_t = wk.T
    wv_t = wv.T
    wo_t = wo.T

    # Reference forward applies o_proj twice for pretraining_tp == 1:
    #   out = attn @ Wo^T @ Wo^T == attn @ (Wo^T @ Wo^T)  -> fold into Wo2.
    wo2 = wo_t @ wo_t                                     # (H, H)

    if param_dtype is not None:
        wq_t = wq_t.astype(param_dtype)
        wk_t = wk_t.astype(param_dtype)
        wv_t = wv_t.astype(param_dtype)
        wo2 = wo2.astype(param_dtype)
    else:
        param_dtype = wq.dtype

    # Per head-block weight tiles so the grid iterates head blocks and weight DMA
    # is tiled over the output dim instead of shipping full (H, H) matrices.
    wq_h = wq_t.reshape(H, nhb, hpb * head_dim).transpose(1, 0, 2)   # (nhb, H, hpb*HD)
    wk_h = wk_t.reshape(H, nhb, hpb * head_dim).transpose(1, 0, 2)
    wv_h = wv_t.reshape(H, nhb, hpb * head_dim).transpose(1, 0, 2)
    wo2_h = wo2.reshape(nhb, hpb * head_dim, H)                      # (nhb, hpb*HD, H)

    # Fold rotate_half's sign into sin so the kernel only needs a lane roll.
    sign = jnp.concatenate([-jnp.ones((head_dim // 2,), jnp.float32),
                            jnp.ones((head_dim // 2,), jnp.float32)])
    cos_f = cos.astype(jnp.float32)
    sin_s = sin.astype(jnp.float32) * sign[None, :]

    return dict(wq=wq_h, wk=wk_h, wv=wv_h, wo2=wo2_h, cos=cos_f, sin=sin_s,
                num_heads=num_heads, head_dim=head_dim, heads_per_block=hpb,
                param_dtype=param_dtype)


# ----------------------------------------------------------------------------
# Forward wrapper.
# ----------------------------------------------------------------------------
def llama_attention_dummykv(x, params, *, batch_block=1, attn_dtype=jnp.bfloat16):
    B, S, H = x.shape
    NH = params["num_heads"]
    HD = params["head_dim"]
    hpb = params["heads_per_block"]
    assert NH * HD == H
    bb = batch_block
    assert B % bb == 0, "batch_block must divide the batch size"
    nhb = NH // hpb

    out_dtype = x.dtype
    # Pre-cast x once (halves its DMA bytes when bf16, removes per-step casts).
    x_in = x.astype(params["param_dtype"])

    kernel = functools.partial(_llama_attn_kernel,
                               head_dim=HD, heads_per_block=hpb,
                               batch_block=bb, attn_dtype=attn_dtype)

    return pl.pallas_call(
        kernel,
        out_shape=jax.ShapeDtypeStruct((B, S, H), out_dtype),
        grid_spec=pltpu.PrefetchScalarGridSpec(
            num_scalar_prefetch=0,
            grid=(B // bb, nhb),
            in_specs=[
                pl.BlockSpec((bb, S, H), lambda b, h: (b, 0, 0)),                      # x
                pl.BlockSpec((pl.Squeezed(), H, hpb * HD), lambda b, h: (h, 0, 0)),    # Wq_t
                pl.BlockSpec((pl.Squeezed(), H, hpb * HD), lambda b, h: (h, 0, 0)),    # Wk_t
                pl.BlockSpec((pl.Squeezed(), H, hpb * HD), lambda b, h: (h, 0, 0)),    # Wv_t
                pl.BlockSpec((pl.Squeezed(), hpb * HD, H), lambda b, h: (h, 0, 0)),    # Wo2
                pl.BlockSpec((S, HD), lambda b, h: (0, 0)),                            # cos
                pl.BlockSpec((S, HD), lambda b, h: (0, 0)),                            # sin
            ],
            out_specs=pl.BlockSpec((bb, S, H), lambda b, h: (b, 0, 0)),
            scratch_shapes=[pltpu.VMEM((bb, S, H), jnp.float32)],
        ),
        compiler_params=pltpu.CompilerParams(
            # batch-group axis is parallel (splits over v7x's 2 TCs); the head
            # axis accumulates into the output, so it is 'arbitrary'.
            dimension_semantics=("parallel", "arbitrary"),
            vmem_limit_bytes=64 * 1024 * 1024),
    )(x_in, params["wq"], params["wk"], params["wv"], params["wo2"],
      params["cos"], params["sin"])


# ----------------------------------------------------------------------------
# Pure-JAX reference (mirrors the PyTorch forward, incl. the double o_proj).
# ----------------------------------------------------------------------------
def reference_forward(x, wq, wk, wv, wo, cos, sin, *, num_heads, head_dim):
    B, S, H = x.shape
    q = x @ wq.T
    k = x @ wk.T
    v = x @ wv.T
    q = q.reshape(B, S, num_heads, head_dim).transpose(0, 2, 1, 3)
    k = k.reshape(B, S, num_heads, head_dim).transpose(0, 2, 1, 3)
    v = v.reshape(B, S, num_heads, head_dim).transpose(0, 2, 1, 3)

    c = cos[None, None]
    s = sin[None, None]
    half = head_dim // 2

    def rot_half(t):
        return jnp.concatenate([-t[..., half:], t[..., :half]], axis=-1)

    q = q * c + rot_half(q) * s
    k = k * c + rot_half(k) * s

    scores = jnp.einsum("bhqd,bhkd->bhqk", q, k) / math.sqrt(head_dim)
    probs = jax.nn.softmax(scores.astype(jnp.float32), axis=-1).astype(q.dtype)
    out = jnp.einsum("bhqk,bhkd->bhqd", probs, v)
    out = out.transpose(0, 2, 1, 3).reshape(B, S, H)
    out = out @ wo.T
    out = out @ wo.T   # reference applies o_proj twice when pretraining_tp == 1
    return out


if __name__ == "__main__":
    # Small Llama-ish config: hidden=256, heads=2 (head_dim=128, lane aligned),
    # num_key_value_heads == num_heads (groups == 1), no attention bias.
    B, S, H = 2, 8, 256
    NUM_HEADS = 2
    HEAD_DIM = H // NUM_HEADS
    ROPE_THETA = 10000.0

    key = jax.random.PRNGKey(0)
    kx, kq, kk, kv, ko = jax.random.split(key, 5)
    x = jax.random.normal(kx, (B, S, H), dtype=jnp.float32)
    wq = jax.random.normal(kq, (H, H), dtype=jnp.float32) * 0.02
    wk = jax.random.normal(kk, (H, H), dtype=jnp.float32) * 0.02
    wv = jax.random.normal(kv, (H, H), dtype=jnp.float32) * 0.02
    wo = jax.random.normal(ko, (H, H), dtype=jnp.float32) * 0.02

    # RoPE tables for position_ids = arange(S) (same for every batch element).
    inv_freq = 1.0 / (ROPE_THETA ** (jnp.arange(0, HEAD_DIM, 2, dtype=jnp.float32)
                                     / HEAD_DIM))
    pos = jnp.arange(S, dtype=jnp.float32)
    freqs = pos[:, None] * inv_freq[None, :]
    emb = jnp.concatenate([freqs, freqs], axis=-1)
    cos = jnp.cos(emb)
    sin = jnp.sin(emb)

    ref = reference_forward(x, wq, wk, wv, wo, cos, sin,
                            num_heads=NUM_HEADS, head_dim=HEAD_DIM)

    # 1) Strict f32 path: 1 head per step, 1 batch per step, f32 attention
    #    operands -- numerics match the reference (fused Wo2, folded scale and
    #    approx reciprocal only change rounding, well inside 1e-3).
    p_f32 = prepare_llama_attention_params(
        wq, wk, wv, wo, cos, sin, num_heads=NUM_HEADS, head_dim=HEAD_DIM,
        heads_per_block=1, param_dtype=jnp.float32)
    out1 = llama_attention_dummykv(x, p_f32, batch_block=1, attn_dtype=jnp.float32)
    out1 = jax.block_until_ready(out1)
    assert out1.shape == (B, S, H)
    err1 = float(jnp.max(jnp.abs(out1 - ref)))
    assert jnp.allclose(out1, ref, atol=1e-3, rtol=1e-3), f"f32 max abs err {err1}"

    # 2) New tiling path with exact dtypes: 2 heads per step (256-wide MXU tiles)
    #    and the whole batch grouped into one grid step (no weight re-streaming).
    p_f32_blk = prepare_llama_attention_params(
        wq, wk, wv, wo, cos, sin, num_heads=NUM_HEADS, head_dim=HEAD_DIM,
        heads_per_block=2, param_dtype=jnp.float32)
    out2 = llama_attention_dummykv(x, p_f32_blk, batch_block=2, attn_dtype=jnp.float32)
    out2 = jax.block_until_ready(out2)
    err2 = float(jnp.max(jnp.abs(out2 - ref)))
    assert jnp.allclose(out2, ref, atol=1e-3, rtol=1e-3), f"tiled f32 max abs err {err2}"

    # 3) Default performance config: bf16 weights/x and bf16 QK^T / PV operands
    #    (f32 accumulation; RoPE/softmax stay f32), 2 heads per step.
    p_bf16 = prepare_llama_attention_params(
        wq, wk, wv, wo, cos, sin, num_heads=NUM_HEADS, head_dim=HEAD_DIM,
        heads_per_block=2, param_dtype=jnp.bfloat16)
    out3 = llama_attention_dummykv(x, p_bf16, batch_block=1)   # attn_dtype=bf16 default
    out3 = jax.block_until_ready(out3)
    err3 = float(jnp.max(jnp.abs(out3 - ref)))
    assert jnp.allclose(out3, ref, atol=3e-2, rtol=3e-2), f"bf16 max abs err {err3}"

    print("KERNEL_OK")
</pallas_src>

<mosaic_0001>
module attributes {stable_mosaic.version = 11 : i64} {
  func.func @_llama_attn_kernel(%arg0: i32, %arg1: i32, %arg2: memref<1x8x256xf32, #tpu.memory_space<vmem>>, %arg3: memref<1x256x128xf32, #tpu.memory_space<vmem>>, %arg4: memref<1x256x128xf32, #tpu.memory_space<vmem>>, %arg5: memref<1x256x128xf32, #tpu.memory_space<vmem>>, %arg6: memref<1x128x256xf32, #tpu.memory_space<vmem>>, %arg7: memref<8x128xf32, #tpu.memory_space<vmem>>, %arg8: memref<8x128xf32, #tpu.memory_space<vmem>>, %arg9: memref<1x8x256xf32, #tpu.memory_space<vmem>>, %arg10: memref<1x8x256xf32, #tpu.memory_space<vmem>>) attributes {dimension_semantics = [#tpu.dimension_semantics<parallel>, #tpu.dimension_semantics<arbitrary>], iteration_bounds = array<i64: 2, 2>, scalar_prefetch = 0 : i64, scratch_operands = 1 : i64, tpu.core_type = #tpu.core_type<tc>, window_params = [{transform_indices = @transform_0, window_bounds = array<i64: 1, 8, 256>}, {transform_indices = @transform_1, window_bounds = array<i64: 1, 256, 128>}, {transform_indices = @transform_2, window_bounds = array<i64: 1, 256, 128>}, {transform_indices = @transform_3, window_bounds = array<i64: 1, 256, 128>}, {transform_indices = @transform_4, window_bounds = array<i64: 1, 128, 256>}, {pipeline_mode = #tpu.pipeline_mode<synchronous>, transform_indices = @transform_5, window_bounds = array<i64: 8, 128>}, {pipeline_mode = #tpu.pipeline_mode<synchronous>, transform_indices = @transform_6, window_bounds = array<i64: 8, 128>}, {transform_indices = @transform_7, window_bounds = array<i64: 1, 8, 256>}]} {
    %c0 = arith.constant 0 : index
    %c0_0 = arith.constant 0 : index
    %c0_1 = arith.constant 0 : index
    %0 = vector.load %arg3[%c0, %c0_0, %c0_1] : memref<1x256x128xf32, #tpu.memory_space<vmem>>, vector<1x256x128xf32>
    %1 = vector.shape_cast %0 : vector<1x256x128xf32> to vector<256x128xf32>
    %c0_2 = arith.constant 0 : index
    %c0_3 = arith.constant 0 : index
    %c0_4 = arith.constant 0 : index
    %2 = vector.load %arg4[%c0_2, %c0_3, %c0_4] : memref<1x256x128xf32, #tpu.memory_space<vmem>>, vector<1x256x128xf32>
    %3 = vector.shape_cast %2 : vector<1x256x128xf32> to vector<256x128xf32>
    %c0_5 = arith.constant 0 : index
    %c0_6 = arith.constant 0 : index
    %c0_7 = arith.constant 0 : index
    %4 = vector.load %arg5[%c0_5, %c0_6, %c0_7] : memref<1x256x128xf32, #tpu.memory_space<vmem>>, vector<1x256x128xf32>
    %5 = vector.shape_cast %4 : vector<1x256x128xf32> to vector<256x128xf32>
    %c0_8 = arith.constant 0 : index
    %c0_9 = arith.constant 0 : index
    %c0_10 = arith.constant 0 : index
    %6 = vector.load %arg6[%c0_8, %c0_9, %c0_10] : memref<1x128x256xf32, #tpu.memory_space<vmem>>, vector<1x128x256xf32>
    %7 = vector.shape_cast %6 : vector<1x128x256xf32> to vector<128x256xf32>
    %c0_11 = arith.constant 0 : index
    %c0_12 = arith.constant 0 : index
    %8 = vector.load %arg7[%c0_11, %c0_12] : memref<8x128xf32, #tpu.memory_space<vmem>>, vector<8x128xf32>
    %c0_13 = arith.constant 0 : index
    %c0_14 = arith.constant 0 : index
    %9 = vector.load %arg8[%c0_13, %c0_14] : memref<8x128xf32, #tpu.memory_space<vmem>>, vector<8x128xf32>
    %c0_15 = arith.constant 0 : index
    %c0_16 = arith.constant 0 : index
    %c0_17 = arith.constant 0 : index
    %10 = vector.load %arg2[%c0_15, %c0_16, %c0_17] : memref<1x8x256xf32, #tpu.memory_space<vmem>>, vector<1x8x256xf32>
    %11 = vector.shape_cast %10 : vector<1x8x256xf32> to vector<8x256xf32>
    %cst = arith.constant dense<0.000000e+00> : vector<8x128xf32>
    %12 = tpu.matmul %11, %1, %cst {dimension_numbers = #tpu.dot_dimension_numbers<[1], [0], [0], [1], [0, 0, 1, 1], [], []>} : vector<8x256xf32>, vector<256x128xf32>, vector<8x128xf32> -> vector<8x128xf32>
    %cst_18 = arith.constant dense<0.000000e+00> : vector<8x128xf32>
    %13 = tpu.matmul %11, %3, %cst_18 {dimension_numbers = #tpu.dot_dimension_numbers<[1], [0], [0], [1], [0, 0, 1, 1], [], []>} : vector<8x256xf32>, vector<256x128xf32>, vector<8x128xf32> -> vector<8x128xf32>
    %cst_19 = arith.constant dense<0.000000e+00> : vector<8x128xf32>
    %14 = tpu.matmul %11, %5, %cst_19 {dimension_numbers = #tpu.dot_dimension_numbers<[1], [0], [0], [1], [0, 0, 1, 1], [], []>} : vector<8x256xf32>, vector<256x128xf32>, vector<8x128xf32> -> vector<8x128xf32>
    %15 = arith.mulf %12, %8 : vector<8x128xf32>
    %c64_i32 = arith.constant 64 : i32
    %16 = tpu.dynamic_rotate %12 by %c64_i32 dim 1 : vector<8x128xf32>, i32 -> vector<8x128xf32>
    %17 = arith.mulf %16, %9 : vector<8x128xf32>
    %18 = arith.addf %15, %17 : vector<8x128xf32>
    %19 = arith.mulf %13, %8 : vector<8x128xf32>
    %c64_i32_20 = arith.constant 64 : i32
    %20 = tpu.dynamic_rotate %13 by %c64_i32_20 dim 1 : vector<8x128xf32>, i32 -> vector<8x128xf32>
    %21 = arith.mulf %20, %9 : vector<8x128xf32>
    %22 = arith.addf %19, %21 : vector<8x128xf32>
    %cst_21 = arith.constant dense<0.000000e+00> : vector<8x8xf32>
    %23 = tpu.matmul %18, %22, %cst_21 {dimension_numbers = #tpu.dot_dimension_numbers<[1], [1], [0], [0], [0, 0, 1, 0], [], []>} : vector<8x128xf32>, vector<8x128xf32>, vector<8x8xf32> -> vector<8x8xf32>
    %cst_22 = arith.constant dense<0xFF800000> : vector<8xf32>
    %24 = vector.multi_reduction <maximumf>, %23, %cst_22 [1] : vector<8x8xf32> to vector<8xf32>
    %25 = vector.shape_cast %24 : vector<8xf32> to vector<8x1xf32>
    %26 = vector.broadcast %25 : vector<8x1xf32> to vector<8x8xf32>
    %27 = arith.subf %23, %26 : vector<8x8xf32>
    %28 = math.exp %27 : vector<8x8xf32>
    %cst_23 = arith.constant dense<0.000000e+00> : vector<8xf32>
    %29 = vector.multi_reduction <add>, %28, %cst_23 [1] : vector<8x8xf32> to vector<8xf32>
    %30 = vector.shape_cast %29 : vector<8xf32> to vector<8x1xf32>
    %31 = tpu.reciprocal %30 {approx = true} : vector<8x1xf32> -> vector<8x1xf32>
    %32 = vector.broadcast %31 : vector<8x1xf32> to vector<8x8xf32>
    %33 = arith.mulf %28, %32 : vector<8x8xf32>
    %cst_24 = arith.constant dense<0.000000e+00> : vector<8x128xf32>
    %34 = tpu.matmul %33, %14, %cst_24 {dimension_numbers = #tpu.dot_dimension_numbers<[1], [0], [0], [1], [0, 0, 1, 1], [], []>} : vector<8x8xf32>, vector<8x128xf32>, vector<8x128xf32> -> vector<8x128xf32>
    %cst_25 = arith.constant dense<0.000000e+00> : vector<8x256xf32>
    %35 = tpu.matmul %34, %7, %cst_25 {dimension_numbers = #tpu.dot_dimension_numbers<[1], [0], [0], [1], [0, 0, 1, 1], [], []>} : vector<8x128xf32>, vector<128x256xf32>, vector<8x256xf32> -> vector<8x256xf32>
    %c0_i32 = arith.constant 0 : i32
    %36 = arith.cmpi eq, %arg1, %c0_i32 : i32
    %37 = arith.extui %36 : i1 to i32
    %c0_i32_26 = arith.constant 0 : i32
    %38 = arith.cmpi ne, %37, %c0_i32_26 : i32
    scf.if %38 {
      %c0_30 = arith.constant 0 : index
      %c0_31 = arith.constant 0 : index
      %c0_32 = arith.constant 0 : index
      %45 = vector.load %arg10[%c0_30, %c0_31, %c0_32] : memref<1x8x256xf32, #tpu.memory_space<vmem>>, vector<1x8x256xf32>
      %46 = vector.shape_cast %45 : vector<1x8x256xf32> to vector<8x256xf32>
      %47 = vector.shape_cast %35 : vector<8x256xf32> to vector<1x8x256xf32>
      tpu.vector_store %arg10[%c0_30, %c0_31, %c0_32], %47 {strides = array<i32>} : memref<1x8x256xf32, #tpu.memory_space<vmem>>, vector<1x8x256xf32>,
    } else {
    }
    %c0_i32_27 = arith.constant 0 : i32
    %39 = arith.cmpi sgt, %arg1, %c0_i32_27 : i32
    %40 = arith.extui %39 : i1 to i32
    %c0_i32_28 = arith.constant 0 : i32
    %41 = arith.cmpi ne, %40, %c0_i32_28 : i32
    scf.if %41 {
      %c0_30 = arith.constant 0 : index
      %c0_31 = arith.constant 0 : index
      %c0_32 = arith.constant 0 : index
      %45 = vector.load %arg10[%c0_30, %c0_31, %c0_32] : memref<1x8x256xf32, #tpu.memory_space<vmem>>, vector<1x8x256xf32>
      %46 = vector.shape_cast %45 : vector<1x8x256xf32> to vector<8x256xf32>
      %47 = arith.addf %46, %35 : vector<8x256xf32>
      %c0_33 = arith.constant 0 : index
      %c0_34 = arith.constant 0 : index
      %c0_35 = arith.constant 0 : index
      %48 = vector.load %arg10[%c0_33, %c0_34, %c0_35] : memref<1x8x256xf32, #tpu.memory_space<vmem>>, vector<1x8x256xf32>
      %49 = vector.shape_cast %48 : vector<1x8x256xf32> to vector<8x256xf32>
      %50 = vector.shape_cast %47 : vector<8x256xf32> to vector<1x8x256xf32>
      tpu.vector_store %arg10[%c0_33, %c0_34, %c0_35], %50 {strides = array<i32>} : memref<1x8x256xf32, #tpu.memory_space<vmem>>, vector<1x8x256xf32>,
    } else {
    }
    %c1_i32 = arith.constant 1 : i32
    %42 = arith.cmpi eq, %arg1, %c1_i32 : i32
    %43 = arith.extui %42 : i1 to i32
    %c0_i32_29 = arith.constant 0 : i32
    %44 = arith.cmpi ne, %43, %c0_i32_29 : i32
    scf.if %44 {
      %c0_30 = arith.constant 0 : index
      %c0_31 = arith.constant 0 : index
      %c0_32 = arith.constant 0 : index
      %45 = vector.load %arg10[%c0_30, %c0_31, %c0_32] : memref<1x8x256xf32, #tpu.memory_space<vmem>>, vector<1x8x256xf32>
      %c0_33 = arith.constant 0 : index
      %c0_34 = arith.constant 0 : index
      %c0_35 = arith.constant 0 : index
      %46 = vector.load %arg9[%c0_33, %c0_34, %c0_35] : memref<1x8x256xf32, #tpu.memory_space<vmem>>, vector<1x8x256xf32>
      tpu.vector_store %arg9[%c0_33, %c0_34, %c0_35], %45 {strides = array<i32>} : memref<1x8x256xf32, #tpu.memory_space<vmem>>, vector<1x8x256xf32>,
    } else {
    }
    return
  }
  func.func @transform_0(%arg0: i32, %arg1: i32) -> (i32, i32, i32) {
    %c0_i32 = arith.constant 0 : i32
    %c0_i32_0 = arith.constant 0 : i32
    %c0_i32_1 = arith.constant 0 : i32
    return %arg0, %c0_i32, %c0_i32_0 : i32, i32, i32
  }
  func.func @transform_1(%arg0: i32, %arg1: i32) -> (i32, i32, i32) {
    %c0_i32 = arith.constant 0 : i32
    %c0_i32_0 = arith.constant 0 : i32
    %c0_i32_1 = arith.constant 0 : i32
    return %arg1, %c0_i32, %c0_i32_0 : i32, i32, i32
  }
  func.func @transform_2(%arg0: i32, %arg1: i32) -> (i32, i32, i32) {
    %c0_i32 = arith.constant 0 : i32
    %c0_i32_0 = arith.constant 0 : i32
    %c0_i32_1 = arith.constant 0 : i32
    return %arg1, %c0_i32, %c0_i32_0 : i32, i32, i32
  }
  func.func @transform_3(%arg0: i32, %arg1: i32) -> (i32, i32, i32) {
    %c0_i32 = arith.constant 0 : i32
    %c0_i32_0 = arith.constant 0 : i32
    %c0_i32_1 = arith.constant 0 : i32
    return %arg1, %c0_i32, %c0_i32_0 : i32, i32, i32
  }
  func.func @transform_4(%arg0: i32, %arg1: i32) -> (i32, i32, i32) {
    %c0_i32 = arith.constant 0 : i32
    %c0_i32_0 = arith.constant 0 : i32
    %c0_i32_1 = arith.constant 0 : i32
    return %arg1, %c0_i32, %c0_i32_0 : i32, i32, i32
  }
  func.func @transform_5(%arg0: i32, %arg1: i32) -> (i32, i32) {
    %c0_i32 = arith.constant 0 : i32
    %c0_i32_0 = arith.constant 0 : i32
    %c0_i32_1 = arith.constant 0 : i32
    return %c0_i32, %c0_i32_0 : i32, i32
  }
  func.func @transform_6(%arg0: i32, %arg1: i32) -> (i32, i32) {
    %c0_i32 = arith.constant 0 : i32
    %c0_i32_0 = arith.constant 0 : i32
    %c0_i32_1 = arith.constant 0 : i32
    return %c0_i32, %c0_i32_0 : i32, i32
  }
  func.func @transform_7(%arg0: i32, %arg1: i32) -> (i32, i32, i32) {
    %c0_i32 = arith.constant 0 : i32
    %c0_i32_0 = arith.constant 0 : i32
    %c0_i32_1 = arith.constant 0 : i32
    return %arg0, %c0_i32, %c0_i32_0 : i32, i32, i32
  }
}

</mosaic_0001>

<llo_original>
// kernel: tpu_custom_call.1
$region0: #{tpu_custom_call.1}
  #allocation0 [shape = 'u32[]', space=smem, size = 0x4, offset = 0x4, fixed_abs, tag = 'smem constant byte address 0x4 - core index']
  #allocation1 [shape = 'u32[144,128]{1,0:T(1,128)}', space=vmem, size = 0x12000, scoped, tag = 'internal scratch']
  #allocation2 [shape = 'f32[1,8,256]{2,1,0:T(8,128)}', space=vmem, size = 0x2000, scoped, tag = 'scratch operand']
  %s0 = inlined_call_operand.hbm [shape: f32[2,8,256], index: 0, kind: input, shape index: {}]
  %s1 = inlined_call_operand.hbm [shape: f32[2,256,128], index: 1, kind: input, shape index: {}]
  %s2 = inlined_call_operand.hbm [shape: f32[2,256,128], index: 2, kind: input, shape index: {}]
  %s3 = inlined_call_operand.hbm [shape: f32[2,256,128], index: 3, kind: input, shape index: {}]
  %s4 = inlined_call_operand.hbm [shape: f32[2,128,256], index: 4, kind: input, shape index: {}]
  %s5 = inlined_call_operand.hbm [shape: f32[8,128], index: 5, kind: input, shape index: {}]
  %s6 = inlined_call_operand.hbm [shape: f32[8,128], index: 6, kind: input, shape index: {}]
  %s7 = inlined_call_operand.hbm [shape: f32[2,8,256], index: 7, kind: output, shape index: {}]
  %s8 = sld [smem:[#allocation0]]
  $region101: #{tpu_custom_call.1} parent=0
    _
  %s10 = ssub.s32 1, %s8
  %s11 = scalar_select 0, %s10, %s8
  $region1: #{tpu_custom_call.1} parent=0
    #allocation3 [shape = 'u8[16384]{0}', space=vmem, size = 0x4000, scoped, tag = 'input window, operand 0']
    #allocation4 [shape = 's32[2]{0}', space=sflag, size = 0x8, scoped, tag = 'scoped memory for tpu_custom_call.1']
    #allocation5 [shape = 's32[2]{0}', space=sflag, size = 0x8, scoped, tag = 'scoped memory for tpu_custom_call.1']
    #allocation6 [shape = 'u8[262144]{0}', space=vmem, size = 0x40000, scoped, tag = 'input window, operand 1']
    #allocation7 [shape = 's32[2]{0}', space=sflag, size = 0x8, scoped, tag = 'scoped memory for tpu_custom_call.1']
    #allocation8 [shape = 'u8[262144]{0}', space=vmem, size = 0x40000, scoped, tag = 'input window, operand 2']
    #allocation9 [shape = 'u8[262144]{0}', space=vmem, size = 0x40000, scoped, tag = 'input window, operand 3']
    #allocation10 [shape = 's32[2]{0}', space=sflag, size = 0x8, scoped, tag = 'scoped memory for tpu_custom_call.1']
    #allocation11 [shape = 'u8[262144]{0}', space=vmem, size = 0x40000, scoped, tag = 'input window, operand 4']
    #allocation12 [shape = 'u8[4096]{0}', space=vmem, size = 0x1000, scoped, tag = 'input window, operand 5, single buffered']
    #allocation13 [shape = 's32[1]{0}', space=sflag, size = 0x4, scoped, tag = 'scoped memory for tpu_custom_call.1']
    #allocation14 [shape = 'u8[4096]{0}', space=vmem, size = 0x1000, scoped, tag = 'input window, operand 6, single buffered']
    #allocation15 [shape = 'u8[16384]{0}', space=vmem, size = 0x4000, scoped, tag = 'output window, operand 0']
    %12 = vsyncpa [#allocation4], 0
    %s13 = scalar_lea.sflag [#allocation4], 1
    %14 = vsyncpa %s13, 0
    %15 = vsyncpa [#allocation7], 0
    %s16 = scalar_lea.sflag [#allocation7], 1
    %17 = vsyncpa %s16, 0
    %18 = vsyncpa [#allocation10], 0
    %s19 = scalar_lea.sflag [#allocation10], 1
    %20 = vsyncpa %s19, 0
    %21 = vsyncpa [#allocation13], 0
    %22 = vsyncpa [#allocation5], 0
    %s23 = scalar_lea.sflag [#allocation5], 1
    %24 = vsyncpa %s23, 0
    loop: start=0, step=1, limit=6
    $region2: #{tpu_custom_call.1} parent=1 // loop_pre_header
      _
    $region3: #{tpu_custom_call.1} parent=1 // loop_header
      %s26 = sphi 0, %s30
      %p27 = scmp.ge.s32.totalorder %s26, 6
      %s33 = sphi 0, %s45
      %s34 = sphi 0, %s41
      %s35 = sphi 0, %s33
      %s36 = sphi 0, %s34
      %s37 = sphi 0, %s35
      %s38 = sphi 0, %s36
      %s48 = sphi 0, %s50
      %s51 = sphi 0, %s48
      %s52 = sphi 0, %s51
      %s68 = sphi 0, %s52
      %s74 = sphi 0, %s76
      %s77 = sphi 0, %s74
      %s78 = sphi 0, %s77
      %s94 = sphi 0, %s78
      %s100 = sphi 0, %s102
      %s103 = sphi 0, %s100
      %s104 = sphi 0, %s103
      %s120 = sphi 0, %s104
      %s126 = sphi 0, %s128
      %s129 = sphi 0, %s126
      %s130 = sphi 0, %s129
      %s146 = sphi 0, %s130
      %s152 = sphi 0, %s154
      %s155 = sphi 0, %s152
      %s156 = sphi 0, %s155
      %s172 = sphi 0, %s156
      %s176 = sphi 0, %s176
      %s178 = sphi 0, %s176
      %s179 = sphi 0, %s178
      %s193 = sphi 0, %s179
      %s197 = sphi 0, %s197
      %s199 = sphi 0, %s197
      %s200 = sphi 0, %s199
      %s214 = sphi 0, %s200
      %s220 = sphi 0, %s222
      %s223 = sphi 0, %s220
      %s224 = sphi 0, %s223
      %s240 = sphi 0, %s224
    $region4: #{tpu_custom_call.1} parent=1 // loop_header_branch
      %29 = sbr.rel (%p27) target = $region8
    $region5: #{tpu_custom_call.1} parent=1 // loop_body
      %s31 = ssub.s32 %s26, 1
      %s32 = ssub.s32 %s26, 2
      %s39 = sadd.s32 1, %s34
      %p40 = scmp.ge.s32.totalorder %s39, 2
      %s41 = scalar_select %p40, 0, %s39
      %s42 = sadd.s32 1, %s33
      %s43 = scalar_select %p40, %s42, %s33
      %p44 = scmp.ge.s32.totalorder %s43, 2
      %s45 = scalar_select %p44, 0, %s43
      %s46 = ssub.s32 %s33, %s45
      %p47 = scmp.eq.s32.totalorder %s46, 0
      %s49 = sadd.s32 %s48, 1
      %s50 = scalar_select %p47, %s48, %s49
      %p53 = pneg %p47
      %p54 = scmp.eq.s32.totalorder %s26, 3
      %p55 = por %p53, %p54
      %p56 = scmp.ne.s32.totalorder %s48, %s51
      %p57 = scmp.eq.s32.totalorder %s26, 0
      %p58 = por %p56, %p57
      %p59 = scmp.ne.s32.totalorder %s48, %s51
      %p60 = scmp.eq.s32.totalorder %s31, 3
      %p61 = por %p59, %p60
      %p62 = scmp.ne.s32.totalorder %s51, %s52
      %p63 = scmp.eq.s32.totalorder %s31, 0
      %p64 = por %p62, %p63
      %p65 = scmp.ne.s32.totalorder %s51, %s52
      %p66 = scmp.eq.s32.totalorder %s32, 3
      %p67 = por %p65, %p66
      %p69 = scmp.ne.s32.totalorder %s52, %s68
      %p70 = scmp.eq.s32.totalorder %s32, 0
      %p71 = por %p69, %p70
      %s72 = ssub.s32 %s34, %s41
      %p73 = scmp.eq.s32.totalorder %s72, 0
      %s75 = sadd.s32 %s74, 1
      %s76 = scalar_select %p73, %s74, %s75
      %p79 = pneg %p73
      %p80 = scmp.eq.s32.totalorder %s26, 3
      %p81 = por %p79, %p80
      %p82 = scmp.ne.s32.totalorder %s74, %s77
      %p83 = scmp.eq.s32.totalorder %s26, 0
      %p84 = por %p82, %p83
      %p85 = scmp.ne.s32.totalorder %s74, %s77
      %p86 = scmp.eq.s32.totalorder %s31, 3
      %p87 = por %p85, %p86
      %p88 = scmp.ne.s32.totalorder %s77, %s78
      %p89 = scmp.eq.s32.totalorder %s31, 0
      %p90 = por %p88, %p89
      %p91 = scmp.ne.s32.totalorder %s77, %s78
      %p92 = scmp.eq.s32.totalorder %s32, 3
      %p93 = por %p91, %p92
      %p95 = scmp.ne.s32.totalorder %s78, %s94
      %p96 = scmp.eq.s32.totalorder %s32, 0
      %p97 = por %p95, %p96
      %s98 = ssub.s32 %s34, %s41
      %p99 = scmp.eq.s32.totalorder %s98, 0
      %s101 = sadd.s32 %s100, 1
      %s102 = scalar_select %p99, %s100, %s101
      %p105 = pneg %p99
      %p106 = scmp.eq.s32.totalorder %s26, 3
      %p107 = por %p105, %p106
      %p108 = scmp.ne.s32.totalorder %s100, %s103
      %p109 = scmp.eq.s32.totalorder %s26, 0
      %p110 = por %p108, %p109
      %p111 = scmp.ne.s32.totalorder %s100, %s103
      %p112 = scmp.eq.s32.totalorder %s31, 3
      %p113 = por %p111, %p112
      %p114 = scmp.ne.s32.totalorder %s103, %s104
      %p115 = scmp.eq.s32.totalorder %s31, 0
      %p116 = por %p114, %p115
      %p117 = scmp.ne.s32.totalorder %s103, %s104
      %p118 = scmp.eq.s32.totalorder %s32, 3
      %p119 = por %p117, %p118
      %p121 = scmp.ne.s32.totalorder %s104, %s120
      %p122 = scmp.eq.s32.totalorder %s32, 0
      %p123 = por %p121, %p122
      %s124 = ssub.s32 %s34, %s41
      %p125 = scmp.eq.s32.totalorder %s124, 0
      %s127 = sadd.s32 %s126, 1
      %s128 = scalar_select %p125, %s126, %s127
      %p131 = pneg %p125
      %p132 = scmp.eq.s32.totalorder %s26, 3
      %p133 = por %p131, %p132
      %p134 = scmp.ne.s32.totalorder %s126, %s129
      %p135 = scmp.eq.s32.totalorder %s26, 0
      %p136 = por %p134, %p135
      %p137 = scmp.ne.s32.totalorder %s126, %s129
      %p138 = scmp.eq.s32.totalorder %s31, 3
      %p139 = por %p137, %p138
      %p140 = scmp.ne.s32.totalorder %s129, %s130
      %p141 = scmp.eq.s32.totalorder %s31, 0
      %p142 = por %p140, %p141
      %p143 = scmp.ne.s32.totalorder %s129, %s130
      %p144 = scmp.eq.s32.totalorder %s32, 3
      %p145 = por %p143, %p144
      %p147 = scmp.ne.s32.totalorder %s130, %s146
      %p148 = scmp.eq.s32.totalorder %s32, 0
      %p149 = por %p147, %p148
      %s150 = ssub.s32 %s34, %s41
      %p151 = scmp.eq.s32.totalorder %s150, 0
      %s153 = sadd.s32 %s152, 1
      %s154 = scalar_select %p151, %s152, %s153
      %p157 = pneg %p151
      %p158 = scmp.eq.s32.totalorder %s26, 3
      %p159 = por %p157, %p158
      %p160 = scmp.ne.s32.totalorder %s152, %s155
      %p161 = scmp.eq.s32.totalorder %s26, 0
      %p162 = por %p160, %p161
      %p163 = scmp.ne.s32.totalorder %s152, %s155
      %p164 = scmp.eq.s32.totalorder %s31, 3
      %p165 = por %p163, %p164
      %p166 = scmp.ne.s32.totalorder %s155, %s156
      %p167 = scmp.eq.s32.totalorder %s31, 0
      %p168 = por %p166, %p167
      %p169 = scmp.ne.s32.totalorder %s155, %s156
      %p170 = scmp.eq.s32.totalorder %s32, 3
      %p171 = por %p169, %p170
      %p173 = scmp.ne.s32.totalorder %s156, %s172
      %p174 = scmp.eq.s32.totalorder %s32, 0
      %p175 = por %p173, %p174
      %s177 = sadd.s32 %s176, 1
      %p180 = scmp.eq.s32.totalorder %s26, 3
      %p181 = scmp.ne.s32.totalorder %s176, %s178
      %p182 = scmp.eq.s32.totalorder %s26, 0
      %p183 = por %p181, %p182
      %p184 = scmp.ne.s32.totalorder %s176, %s178
      %p185 = scmp.eq.s32.totalorder %s31, 3
      %p186 = por %p184, %p185
      %p187 = scmp.ne.s32.totalorder %s178, %s179
      %p188 = scmp.eq.s32.totalorder %s31, 0
      %p189 = por %p187, %p188
      %p190 = scmp.ne.s32.totalorder %s178, %s179
      %p191 = scmp.eq.s32.totalorder %s32, 3
      %p192 = por %p190, %p191
      %p194 = scmp.ne.s32.totalorder %s179, %s193
      %p195 = scmp.eq.s32.totalorder %s32, 0
      %p196 = por %p194, %p195
      %s198 = sadd.s32 %s197, 1
      %p201 = scmp.eq.s32.totalorder %s26, 3
      %p202 = scmp.ne.s32.totalorder %s197, %s199
      %p203 = scmp.eq.s32.totalorder %s26, 0
      %p204 = por %p202, %p203
      %p205 = scmp.ne.s32.totalorder %s197, %s199
      %p206 = scmp.eq.s32.totalorder %s31, 3
      %p207 = por %p205, %p206
      %p208 = scmp.ne.s32.totalorder %s199, %s200
      %p209 = scmp.eq.s32.totalorder %s31, 0
      %p210 = por %p208, %p209
      %p211 = scmp.ne.s32.totalorder %s199, %s200
      %p212 = scmp.eq.s32.totalorder %s32, 3
      %p213 = por %p211, %p212
      %p215 = scmp.ne.s32.totalorder %s200, %s214
      %p216 = scmp.eq.s32.totalorder %s32, 0
      %p217 = por %p215, %p216
      %s218 = ssub.s32 %s33, %s45
      %p219 = scmp.eq.s32.totalorder %s218, 0
      %s221 = sadd.s32 %s220, 1
      %s222 = scalar_select %p219, %s220, %s221
      %p225 = pneg %p219
      %p226 = scmp.eq.s32.totalorder %s26, 3
      %p227 = por %p225, %p226
      %p228 = scmp.ne.s32.totalorder %s220, %s223
      %p229 = scmp.eq.s32.totalorder %s26, 0
      %p230 = por %p228, %p229
      %p231 = scmp.ne.s32.totalorder %s220, %s223
      %p232 = scmp.eq.s32.totalorder %s31, 3
      %p233 = por %p231, %p232
      %p234 = scmp.ne.s32.totalorder %s223, %s224
      %p235 = scmp.eq.s32.totalorder %s31, 0
      %p236 = por %p234, %p235
      %p237 = scmp.ne.s32.totalorder %s223, %s224
      %p238 = scmp.eq.s32.totalorder %s32, 3
      %p239 = por %p237, %p238
      %p241 = scmp.ne.s32.totalorder %s224, %s240
      %p242 = scmp.eq.s32.totalorder %s32, 0
      %p243 = por %p241, %p242
      %p244 = scmp.le.s32.totalorder 1, %s26
      %p245 = scmp.lt.s32.totalorder %s26, 5
      %p246 = pnand %p244, %p245
      %p247 = pneg %p246
      // Predicated region
      $region9: #{tpu_custom_call.1} parent=5 // pred_check
        _
      $region10: #{tpu_custom_call.1} parent=5 // pred_check_branch
        %249 = sbr.rel (%p246) target = $region12
      $region11: #{tpu_custom_call.1} parent=5 // pred_region
        %s250 = ssub.s32 %s26, 1
        // Predicated region
        $region13: #{tpu_custom_call.1} parent=11 // pred_check
          %p251 = pneg %p189
        $region14: #{tpu_custom_call.1} parent=11 // pred_check_branch
          %253 = sbr.rel (%p251) target = $region16
        $region15: #{tpu_custom_call.1} parent=11 // pred_region
          %s255 = ssub.s32 128, 128
          %256 = vsyncadd [#allocation13], %s255
          %s258 = sshll.u32 [#allocation12], 4
          %s259 = int_to_ptr.vmem [resolvable:$true] %s258
          %261 = dma.hbm_to_vmem [thread:$0]  %s5, 128, %s259, [#allocation13]
        $region16: #{tpu_custom_call.1} parent=11 // pred_fallthru
          _
        // Predicated region
        $region17: #{tpu_custom_call.1} parent=11 // pred_check
          %p262 = pneg %p210
        $region18: #{tpu_custom_call.1} parent=11 // pred_check_branch
          %264 = sbr.rel (%p262) target = $region20
        $region19: #{tpu_custom_call.1} parent=11 // pred_region
          %s266 = ssub.s32 128, 128
          %267 = vsyncadd [#allocation13], %s266
          %s269 = sshll.u32 [#allocation14], 4
          %s270 = int_to_ptr.vmem [resolvable:$true] %s269
          %272 = dma.hbm_to_vmem [thread:$0]  %s6, 128, %s270, [#allocation13]
        $region20: #{tpu_custom_call.1} parent=11 // pred_fallthru
          _
      $region12: #{tpu_custom_call.1} parent=5 // pred_fallthru
        _
      %p273 = scmp.lt.s32.totalorder %s26, 4
      // Predicated region
      $region21: #{tpu_custom_call.1} parent=5 // pred_check
        %p274 = pneg %p273
      $region22: #{tpu_custom_call.1} parent=5 // pred_check_branch
        %276 = sbr.rel (%p274) target = $region24
      $region23: #{tpu_custom_call.1} parent=5 // pred_region
        // Predicated region
        $region25: #{tpu_custom_call.1} parent=23 // pred_check
          %p277 = pneg %p58
        $region26: #{tpu_custom_call.1} parent=23 // pred_check_branch
          %279 = sbr.rel (%p277) target = $region28
        $region27: #{tpu_custom_call.1} parent=23 // pred_region
          %s280 = sand.u32 %s48, 1
          %s281 = scalar_lea.sflag [#allocation4], %s280
          %s282 = sand.u32 %s48, 1
          %s283 = smul.addr %s282, 16
          %s284 = scalar_lea.vmem [#allocation3], %s283
          %s286 = ssub.s32 256, 256
          %287 = vsyncadd %s281, %s286
          %s288 = smul.addr %s33, 2
          %s289 = smul.addr %s288, 128
          %s290 = scalar_lea.hbm %s0, %s289
          %s292 = sshll.u32 %s284, 4
          %s293 = int_to_ptr.vmem [resolvable:$true] %s292
          %295 = dma.hbm_to_vmem [thread:$0]  %s290, 256, %s293, %s281
        $region28: #{tpu_custom_call.1} parent=23 // pred_fallthru
          _
        // Predicated region
        $region29: #{tpu_custom_call.1} parent=23 // pred_check
          %p296 = pneg %p84
        $region30: #{tpu_custom_call.1} parent=23 // pred_check_branch
          %298 = sbr.rel (%p296) target = $region32
        $region31: #{tpu_custom_call.1} parent=23 // pred_region
          %s299 = sand.u32 %s26, 1
          %s300 = scalar_lea.sflag [#allocation7], %s299
          %s301 = sand.u32 %s74, 1
          %s302 = smul.addr %s301, 256
          %s303 = scalar_lea.vmem [#allocation6], %s302
          %s305 = ssub.s32 4096, 4096
          %306 = vsyncadd %s300, %s305
          %s307 = smul.addr %s34, 32
          %s308 = smul.addr %s307, 128
          %s309 = scalar_lea.hbm %s1, %s308
          %s310 = sshll.u32 %s303, 4
          %s311 = int_to_ptr.vmem [resolvable:$true] %s310
          %316 = dma.hbm_to_vmem [thread:$0]  %s309, 4096, %s311, %s300, 128, 128, 8
        $region32: #{tpu_custom_call.1} parent=23 // pred_fallthru
          _
        // Predicated region
        $region33: #{tpu_custom_call.1} parent=23 // pred_check
          %p317 = pneg %p110
        $region34: #{tpu_custom_call.1} parent=23 // pred_check_branch
          %319 = sbr.rel (%p317) target = $region36
        $region35: #{tpu_custom_call.1} parent=23 // pred_region
          %s320 = sand.u32 %s26, 1
          %s321 = scalar_lea.sflag [#allocation7], %s320
          %s322 = sand.u32 %s100, 1
          %s323 = smul.addr %s322, 256
          %s324 = scalar_lea.vmem [#allocation8], %s323
          %s326 = ssub.s32 4096, 4096
          %327 = vsyncadd %s321, %s326
          %s328 = smul.addr %s34, 32
          %s329 = smul.addr %s328, 128
          %s330 = scalar_lea.hbm %s2, %s329
          %s331 = sshll.u32 %s324, 4
          %s332 = int_to_ptr.vmem [resolvable:$true] %s331
          %337 = dma.hbm_to_vmem [thread:$0]  %s330, 4096, %s332, %s321, 128, 128, 8
        $region36: #{tpu_custom_call.1} parent=23 // pred_fallthru
          _
        // Predicated region
        $region37: #{tpu_custom_call.1} parent=23 // pred_check
          %p338 = pneg %p136
        $region38: #{tpu_custom_call.1} parent=23 // pred_check_branch
          %340 = sbr.rel (%p338) target = $region40
        $region39: #{tpu_custom_call.1} parent=23 // pred_region
          %s341 = sand.u32 %s26, 1
          %s342 = scalar_lea.sflag [#allocation10], %s341
          %s343 = sand.u32 %s126, 1
          %s344 = smul.addr %s343, 256
          %s345 = scalar_lea.vmem [#allocation9], %s344
          %s347 = ssub.s32 4096, 4096
          %348 = vsyncadd %s342, %s347
          %s349 = smul.addr %s34, 32
          %s350 = smul.addr %s349, 128
          %s351 = scalar_lea.hbm %s3, %s350
          %s352 = sshll.u32 %s345, 4
          %s353 = int_to_ptr.vmem [resolvable:$true] %s352
          %358 = dma.hbm_to_vmem [thread:$0]  %s351, 4096, %s353, %s342, 128, 128, 8
        $region40: #{tpu_custom_call.1} parent=23 // pred_fallthru
          _
        // Predicated region
        $region41: #{tpu_custom_call.1} parent=23 // pred_check
          %p359 = pneg %p162
        $region42: #{tpu_custom_call.1} parent=23 // pred_check_branch
          %361 = sbr.rel (%p359) target = $region44
        $region43: #{tpu_custom_call.1} parent=23 // pred_region
          %s362 = sand.u32 %s26, 1
          %s363 = scalar_lea.sflag [#allocation10], %s362
          %s364 = sand.u32 %s152, 1
          %s365 = smul.addr %s364, 256
          %s366 = scalar_lea.vmem [#allocation11], %s365
          %s368 = ssub.s32 4096, 4096
          %369 = vsyncadd %s363, %s368
          %s370 = smul.addr %s34, 32
          %s371 = smul.addr %s370, 128
          %s372 = scalar_lea.hbm %s4, %s371
          %s373 = sshll.u32 %s366, 4
          %s374 = int_to_ptr.vmem [resolvable:$true] %s373
          %379 = dma.hbm_to_vmem [thread:$0]  %s372, 4096, %s374, %s363, 256, 256, 16
        $region44: #{tpu_custom_call.1} parent=23 // pred_fallthru
          _
      $region24: #{tpu_custom_call.1} parent=5 // pred_fallthru
        _
      %p380 = scmp.le.s32.totalorder 1, %s26
      %p381 = scmp.lt.s32.totalorder %s26, 5
      %p382 = pnand %p380, %p381
      %p383 = pneg %p382
      // Predicated region
      $region45: #{tpu_custom_call.1} parent=5 // pred_check
        _
      $region46: #{tpu_custom_call.1} parent=5 // pred_check_branch
        %385 = sbr.rel (%p382) target = $region48
      $region47: #{tpu_custom_call.1} parent=5 // pred_region
        %s386 = ssub.s32 %s26, 1
        %s387 = sand.u32 %s51, 1
        %s388 = scalar_lea.sflag [#allocation4], %s387
        %s389 = sand.u32 %s51, 1
        %s390 = smul.addr %s389, 16
        %s391 = scalar_lea.vmem [#allocation3], %s390
        // Predicated region
        $region49: #{tpu_custom_call.1} parent=47 // pred_check
          %p392 = pneg %p64
        $region50: #{tpu_custom_call.1} parent=47 // pred_check_branch
          %394 = sbr.rel (%p392) target = $region52
        $region51: #{tpu_custom_call.1} parent=47 // pred_region
          %395 = dma.done %s388, 256
        $region52: #{tpu_custom_call.1} parent=47 // pred_fallthru
          _
        %s396 = sand.u32 %s31, 1
        %s397 = scalar_lea.sflag [#allocation7], %s396
        %s398 = sand.u32 %s77, 1
        %s399 = smul.addr %s398, 256
        %s400 = scalar_lea.vmem [#allocation6], %s399
        // Predicated region
        $region53: #{tpu_custom_call.1} parent=47 // pred_check
          %p401 = pneg %p90
        $region54: #{tpu_custom_call.1} parent=47 // pred_check_branch
          %403 = sbr.rel (%p401) target = $region56
        $region55: #{tpu_custom_call.1} parent=47 // pred_region
          %404 = dma.done %s397, 4096
        $region56: #{tpu_custom_call.1} parent=47 // pred_fallthru
          _
        %s405 = sand.u32 %s31, 1
        %s406 = scalar_lea.sflag [#allocation7], %s405
        %s407 = sand.u32 %s103, 1
        %s408 = smul.addr %s407, 256
        %s409 = scalar_lea.vmem [#allocation8], %s408
        // Predicated region
        $region57: #{tpu_custom_call.1} parent=47 // pred_check
          %p410 = pneg %p116
        $region58: #{tpu_custom_call.1} parent=47 // pred_check_branch
          %412 = sbr.rel (%p410) target = $region60
        $region59: #{tpu_custom_call.1} parent=47 // pred_region
          %413 = dma.done %s406, 4096
        $region60: #{tpu_custom_call.1} parent=47 // pred_fallthru
          _
        %s414 = sand.u32 %s31, 1
        %s415 = scalar_lea.sflag [#allocation10], %s414
        %s416 = sand.u32 %s129, 1
        %s417 = smul.addr %s416, 256
        %s418 = scalar_lea.vmem [#allocation9], %s417
        // Predicated region
        $region61: #{tpu_custom_call.1} parent=47 // pred_check
          %p419 = pneg %p142
        $region62: #{tpu_custom_call.1} parent=47 // pred_check_branch
          %421 = sbr.rel (%p419) target = $region64
        $region63: #{tpu_custom_call.1} parent=47 // pred_region
          %422 = dma.done %s415, 4096
        $region64: #{tpu_custom_call.1} parent=47 // pred_fallthru
          _
        %s423 = sand.u32 %s31, 1
        %s424 = scalar_lea.sflag [#allocation10], %s423
        %s425 = sand.u32 %s155, 1
        %s426 = smul.addr %s425, 256
        %s427 = scalar_lea.vmem [#allocation11], %s426
        // Predicated region
        $region65: #{tpu_custom_call.1} parent=47 // pred_check
          %p428 = pneg %p168
        $region66: #{tpu_custom_call.1} parent=47 // pred_check_branch
          %430 = sbr.rel (%p428) target = $region68
        $region67: #{tpu_custom_call.1} parent=47 // pred_region
          %431 = dma.done %s424, 4096
        $region68: #{tpu_custom_call.1} parent=47 // pred_fallthru
          _
        // Predicated region
        $region69: #{tpu_custom_call.1} parent=47 // pred_check
          %p432 = pneg %p189
        $region70: #{tpu_custom_call.1} parent=47 // pred_check_branch
          %434 = sbr.rel (%p432) target = $region72
        $region71: #{tpu_custom_call.1} parent=47 // pred_region
          %435 = dma.done [#allocation13], 128
        $region72: #{tpu_custom_call.1} parent=47 // pred_fallthru
          _
        // Predicated region
        $region73: #{tpu_custom_call.1} parent=47 // pred_check
          %p436 = pneg %p210
        $region74: #{tpu_custom_call.1} parent=47 // pred_check_branch
          %438 = sbr.rel (%p436) target = $region76
        $region75: #{tpu_custom_call.1} parent=47 // pred_region
          %439 = dma.done [#allocation13], 128
        $region76: #{tpu_custom_call.1} parent=47 // pred_fallthru
          _
        %s440 = sand.u32 %s51, 1
        %s441 = scalar_lea.sflag [#allocation4], %s440
        %s442 = sand.u32 %s51, 1
        %s443 = smul.addr %s442, 16
        %s444 = scalar_lea.vmem [#allocation3], %s443
        %p445 = pneg %p64
        %p446 = pneg %p61
        %s447 = sand.u32 %s31, 1
        %s448 = scalar_lea.sflag [#allocation7], %s447
        %s449 = sand.u32 %s77, 1
        %s450 = smul.addr %s449, 256
        %s451 = scalar_lea.vmem [#allocation6], %s450
        %p452 = pneg %p90
        %p453 = pneg %p87
        %s454 = sand.u32 %s31, 1
        %s455 = scalar_lea.sflag [#allocation7], %s454
        %s456 = sand.u32 %s103, 1
        %s457 = smul.addr %s456, 256
        %s458 = scalar_lea.vmem [#allocation8], %s457
        %p459 = pneg %p116
        %p460 = pneg %p113
        %s461 = sand.u32 %s31, 1
        %s462 = scalar_lea.sflag [#allocation10], %s461
        %s463 = sand.u32 %s129, 1
        %s464 = smul.addr %s463, 256
        %s465 = scalar_lea.vmem [#allocation9], %s464
        %p466 = pneg %p142
        %p467 = pneg %p139
        %s468 = sand.u32 %s31, 1
        %s469 = scalar_lea.sflag [#allocation10], %s468
        %s470 = sand.u32 %s155, 1
        %s471 = smul.addr %s470, 256
        %s472 = scalar_lea.vmem [#allocation11], %s471
        %p473 = pneg %p168
        %p474 = pneg %p165
        %p475 = pneg %p189
        %p476 = pneg %p186
        %p477 = pneg %p210
        %p478 = pneg %p207
        %p479 = pneg %p236
        %p480 = pneg %p233
        %s481 = sand.u32 %s223, 1
        %s482 = scalar_lea.sflag [#allocation5], %s481
        %s483 = sand.u32 %s223, 1
        %s484 = smul.addr %s483, 16
        %s485 = scalar_lea.vmem [#allocation15], %s484
        %v486 = vld [vmem:[%s400] sm:$0xff]
        %v487 = vld [vmem:[%s400 + $0x8] sm:$0xff]
        %v488 = vld [vmem:[%s400 + $0x10] sm:$0xff]
        %v489 = vld [vmem:[%s400 + $0x18] sm:$0xff]
        %v490 = vld [vmem:[%s400 + $0x20] sm:$0xff]
        %v491 = vld [vmem:[%s400 + $0x28] sm:$0xff]
        %v492 = vld [vmem:[%s400 + $0x30] sm:$0xff]
        %v493 = vld [vmem:[%s400 + $0x38] sm:$0xff]
        %v494 = vld [vmem:[%s400 + $0x40] sm:$0xff]
        %v495 = vld [vmem:[%s400 + $0x48] sm:$0xff]
        %v496 = vld [vmem:[%s400 + $0x50] sm:$0xff]
        %v497 = vld [vmem:[%s400 + $0x58] sm:$0xff]
        %v498 = vld [vmem:[%s400 + $0x60] sm:$0xff]
        %v499 = vld [vmem:[%s400 + $0x68] sm:$0xff]
        %v500 = vld [vmem:[%s400 + $0x70] sm:$0xff]
        %v501 = vld [vmem:[%s400 + $0x78] sm:$0xff]
        %v502 = vld [vmem:[%s400 + $0x80] sm:$0xff]
        %v503 = vld [vmem:[%s400 + $0x88] sm:$0xff]
        %v504 = vld [vmem:[%s400 + $0x90] sm:$0xff]
        %v505 = vld [vmem:[%s400 + $0x98] sm:$0xff]
        %v506 = vld [vmem:[%s400 + $0xa0] sm:$0xff]
        %v507 = vld [vmem:[%s400 + $0xa8] sm:$0xff]
        %v508 = vld [vmem:[%s400 + $0xb0] sm:$0xff]
        %v509 = vld [vmem:[%s400 + $0xb8] sm:$0xff]
        %v510 = vld [vmem:[%s400 + $0xc0] sm:$0xff]
        %v511 = vld [vmem:[%s400 + $0xc8] sm:$0xff]
        %v512 = vld [vmem:[%s400 + $0xd0] sm:$0xff]
        %v513 = vld [vmem:[%s400 + $0xd8] sm:$0xff]
        %v514 = vld [vmem:[%s400 + $0xe0] sm:$0xff]
        %v515 = vld [vmem:[%s400 + $0xe8] sm:$0xff]
        %v516 = vld [vmem:[%s400 + $0xf0] sm:$0xff]
        %v517 = vld [vmem:[%s400 + $0xf8] sm:$0xff]
        %v518 = vld [vmem:[%s409] sm:$0xff]
        %v519 = vld [vmem:[%s409 + $0x8] sm:$0xff]
        %v520 = vld [vmem:[%s409 + $0x10] sm:$0xff]
        %v521 = vld [vmem:[%s409 + $0x18] sm:$0xff]
        %v522 = vld [vmem:[%s409 + $0x20] sm:$0xff]
        %v523 = vld [vmem:[%s409 + $0x28] sm:$0xff]
        %v524 = vld [vmem:[%s409 + $0x30] sm:$0xff]
        %v525 = vld [vmem:[%s409 + $0x38] sm:$0xff]
        %v526 = vld [vmem:[%s409 + $0x40] sm:$0xff]
        %v527 = vld [vmem:[%s409 + $0x48] sm:$0xff]
        %v528 = vld [vmem:[%s409 + $0x50] sm:$0xff]
        %v529 = vld [vmem:[%s409 + $0x58] sm:$0xff]
        %v530 = vld [vmem:[%s409 + $0x60] sm:$0xff]
        %v531 = vld [vmem:[%s409 + $0x68] sm:$0xff]
        %v532 = vld [vmem:[%s409 + $0x70] sm:$0xff]
        %v533 = vld [vmem:[%s409 + $0x78] sm:$0xff]
        %v534 = vld [vmem:[%s409 + $0x80] sm:$0xff]
        %v535 = vld [vmem:[%s409 + $0x88] sm:$0xff]
        %v536 = vld [vmem:[%s409 + $0x90] sm:$0xff]
        %v537 = vld [vmem:[%s409 + $0x98] sm:$0xff]
        %v538 = vld [vmem:[%s409 + $0xa0] sm:$0xff]
        %v539 = vld [vmem:[%s409 + $0xa8] sm:$0xff]
        %v540 = vld [vmem:[%s409 + $0xb0] sm:$0xff]
        %v541 = vld [vmem:[%s409 + $0xb8] sm:$0xff]
        %v542 = vld [vmem:[%s409 + $0xc0] sm:$0xff]
        %v543 = vld [vmem:[%s409 + $0xc8] sm:$0xff]
        %v544 = vld [vmem:[%s409 + $0xd0] sm:$0xff]
        %v545 = vld [vmem:[%s409 + $0xd8] sm:$0xff]
        %v546 = vld [vmem:[%s409 + $0xe0] sm:$0xff]
        %v547 = vld [vmem:[%s409 + $0xe8] sm:$0xff]
        %v548 = vld [vmem:[%s409 + $0xf0] sm:$0xff]
        %v549 = vld [vmem:[%s409 + $0xf8] sm:$0xff]
        %v550 = vld [vmem:[%s418] sm:$0xff]
        %v551 = vld [vmem:[%s418 + $0x8] sm:$0xff]
        %v552 = vld [vmem:[%s418 + $0x10] sm:$0xff]
        %v553 = vld [vmem:[%s418 + $0x18] sm:$0xff]
        %v554 = vld [vmem:[%s418 + $0x20] sm:$0xff]
        %v555 = vld [vmem:[%s418 + $0x28] sm:$0xff]
        %v556 = vld [vmem:[%s418 + $0x30] sm:$0xff]
        %v557 = vld [vmem:[%s418 + $0x38] sm:$0xff]
        %v558 = vld [vmem:[%s418 + $0x40] sm:$0xff]
        %v559 = vld [vmem:[%s418 + $0x48] sm:$0xff]
        %v560 = vld [vmem:[%s418 + $0x50] sm:$0xff]
        %v561 = vld [vmem:[%s418 + $0x58] sm:$0xff]
        %v562 = vld [vmem:[%s418 + $0x60] sm:$0xff]
        %v563 = vld [vmem:[%s418 + $0x68] sm:$0xff]
        %v564 = vld [vmem:[%s418 + $0x70] sm:$0xff]
        %v565 = vld [vmem:[%s418 + $0x78] sm:$0xff]
        %v566 = vld [vmem:[%s418 + $0x80] sm:$0xff]
        %v567 = vld [vmem:[%s418 + $0x88] sm:$0xff]
        %v568 = vld [vmem:[%s418 + $0x90] sm:$0xff]
        %v569 = vld [vmem:[%s418 + $0x98] sm:$0xff]
        %v570 = vld [vmem:[%s418 + $0xa0] sm:$0xff]
        %v571 = vld [vmem:[%s418 + $0xa8] sm:$0xff]
        %v572 = vld [vmem:[%s418 + $0xb0] sm:$0xff]
        %v573 = vld [vmem:[%s418 + $0xb8] sm:$0xff]
        %v574 = vld [vmem:[%s418 + $0xc0] sm:$0xff]
        %v575 = vld [vmem:[%s418 + $0xc8] sm:$0xff]
        %v576 = vld [vmem:[%s418 + $0xd0] sm:$0xff]
        %v577 = vld [vmem:[%s418 + $0xd8] sm:$0xff]
        %v578 = vld [vmem:[%s418 + $0xe0] sm:$0xff]
        %v579 = vld [vmem:[%s418 + $0xe8] sm:$0xff]
        %v580 = vld [vmem:[%s418 + $0xf0] sm:$0xff]
        %v581 = vld [vmem:[%s418 + $0xf8] sm:$0xff]
        %v582 = vld [vmem:[%s427] sm:$0xff]
        %v583 = vld [vmem:[%s427 + $0x8] sm:$0xff]
        %v584 = vld [vmem:[%s427 + $0x10] sm:$0xff]
        %v585 = vld [vmem:[%s427 + $0x18] sm:$0xff]
        %v586 = vld [vmem:[%s427 + $0x20] sm:$0xff]
        %v587 = vld [vmem:[%s427 + $0x28] sm:$0xff]
        %v588 = vld [vmem:[%s427 + $0x30] sm:$0xff]
        %v589 = vld [vmem:[%s427 + $0x38] sm:$0xff]
        %v590 = vld [vmem:[%s427 + $0x40] sm:$0xff]
        %v591 = vld [vmem:[%s427 + $0x48] sm:$0xff]
        %v592 = vld [vmem:[%s427 + $0x50] sm:$0xff]
        %v593 = vld [vmem:[%s427 + $0x58] sm:$0xff]
        %v594 = vld [vmem:[%s427 + $0x60] sm:$0xff]
        %v595 = vld [vmem:[%s427 + $0x68] sm:$0xff]
        %v596 = vld [vmem:[%s427 + $0x70] sm:$0xff]
        %v597 = vld [vmem:[%s427 + $0x78] sm:$0xff]
        %v598 = vld [vmem:[%s427 + $0x80] sm:$0xff]
        %v599 = vld [vmem:[%s427 + $0x88] sm:$0xff]
        %v600 = vld [vmem:[%s427 + $0x90] sm:$0xff]
        %v601 = vld [vmem:[%s427 + $0x98] sm:$0xff]
        %v602 = vld [vmem:[%s427 + $0xa0] sm:$0xff]
        %v603 = vld [vmem:[%s427 + $0xa8] sm:$0xff]
        %v604 = vld [vmem:[%s427 + $0xb0] sm:$0xff]
        %v605 = vld [vmem:[%s427 + $0xb8] sm:$0xff]
        %v606 = vld [vmem:[%s427 + $0xc0] sm:$0xff]
        %v607 = vld [vmem:[%s427 + $0xc8] sm:$0xff]
        %v608 = vld [vmem:[%s427 + $0xd0] sm:$0xff]
        %v609 = vld [vmem:[%s427 + $0xd8] sm:$0xff]
        %v610 = vld [vmem:[%s427 + $0xe0] sm:$0xff]
        %v611 = vld [vmem:[%s427 + $0xe8] sm:$0xff]
        %v612 = vld [vmem:[%s427 + $0xf0] sm:$0xff]
        %v613 = vld [vmem:[%s427 + $0xf8] sm:$0xff]
        %v614 = vld [vmem:[#allocation12] sm:$0xff]
        %v615 = vld [vmem:[#allocation14] sm:$0xff]
        %v616 = vld [vmem:[%s391] sm:$0xff]
        %v617 = vld [vmem:[%s391 + $0x8] sm:$0xff]
        %618 = vmatprep.subr.mxu0 0.0
        %619 = vmatpush1.msra.mxu0 %v486
        %620 = vmatprep.subr.mxu0 0.0
        %621 = vmatpush1.msra.mxu0 %v487
        %622 = vmatprep.subr.mxu0 0.0
        %623 = vmatpush1.msra.mxu0 %v488
        %624 = vmatprep.subr.mxu0 0.0
        %625 = vmatpush1.msra.mxu0 %v489
        %626 = vmatprep.subr.mxu0 0.0
        %627 = vmatpush1.msra.mxu0 %v490
        %628 = vmatprep.subr.mxu0 0.0
        %629 = vmatpush1.msra.mxu0 %v491
        %630 = vmatprep.subr.mxu0 0.0
        %631 = vmatpush1.msra.mxu0 %v492
        %632 = vmatprep.subr.mxu0 0.0
        %633 = vmatpush1.msra.mxu0 %v493
        %634 = vmatprep.subr.mxu0 0.0
        %635 = vmatpush1.msra.mxu0 %v494
        %636 = vmatprep.subr.mxu0 0.0
        %637 = vmatpush1.msra.mxu0 %v495
        %638 = vmatprep.subr.mxu0 0.0
        %639 = vmatpush1.msra.mxu0 %v496
        %640 = vmatprep.subr.mxu0 0.0
        %641 = vmatpush1.msra.mxu0 %v497
        %642 = vmatprep.subr.mxu0 0.0
        %643 = vmatpush1.msra.mxu0 %v498
        %644 = vmatprep.subr.mxu0 0.0
        %645 = vmatpush1.msra.mxu0 %v499
        %646 = vmatprep.subr.mxu0 0.0
        %647 = vmatpush1.msra.mxu0 %v500
        %648 = vmatprep.subr.mxu0 0.0
        %649 = vmatpush1.msra.mxu0 %v501
        %650 = vmatprep.subr.mxu0 0.0
        %651 = vmatpush1.msra.mxu0 %v502
        %652 = vmatprep.subr.mxu0 0.0
        %653 = vmatpush1.msra.mxu0 %v503
        %654 = vmatprep.subr.mxu0 0.0
        %655 = vmatpush1.msra.mxu0 %v504
        %656 = vmatprep.subr.mxu0 0.0
        %657 = vmatpush1.msra.mxu0 %v505
        %658 = vmatprep.subr.mxu0 0.0
        %659 = vmatpush1.msra.mxu0 %v506
        %660 = vmatprep.subr.mxu0 0.0
        %661 = vmatpush1.msra.mxu0 %v507
        %662 = vmatprep.subr.mxu0 0.0
        %663 = vmatpush1.msra.mxu0 %v508
        %664 = vmatprep.subr.mxu0 0.0
        %665 = vmatpush1.msra.mxu0 %v509
        %666 = vmatprep.subr.mxu0 0.0
        %667 = vmatpush1.msra.mxu0 %v510
        %668 = vmatprep.subr.mxu0 0.0
        %669 = vmatpush1.msra.mxu0 %v511
        %670 = vmatprep.subr.mxu0 0.0
        %671 = vmatpush1.msra.mxu0 %v512
        %672 = vmatprep.subr.mxu0 0.0
        %673 = vmatpush1.msra.mxu0 %v513
        %674 = vmatprep.subr.mxu0 0.0
        %675 = vmatpush1.msra.mxu0 %v514
        %676 = vmatprep.subr.mxu0 0.0
        %677 = vmatpush1.msra.mxu0 %v515
        %678 = vmatprep.subr.mxu0 0.0
        %679 = vmatpush1.msra.mxu0 %v516
        %680 = vmatprep.subr.mxu0 0.0
        %681 = vmatpush1.msra.mxu0 %v517
        %682 = vmatprep.mubr.f32.mxu0 %v617
        %683 = vmatmul.mubr.f32.gmra.mrb[0].mxu0 %v616
        %v684 = vpop.f32.mrb[0].mxu0
        %v685 = vadd.f32 0.0, %v684
        %v686 = vpop.f32.mrb[0].mxu0
        %687 = vdwg.mxu0
        %688 = vmatprep.subr.mxu0 0.0
        %689 = vmatpush1.msra.mxu0 %v518
        %690 = vmatprep.subr.mxu0 0.0
        %691 = vmatpush1.msra.mxu0 %v519
        %692 = vmatprep.subr.mxu0 0.0
        %693 = vmatpush1.msra.mxu0 %v520
        %694 = vmatprep.subr.mxu0 0.0
        %695 = vmatpush1.msra.mxu0 %v521
        %696 = vmatprep.subr.mxu0 0.0
        %697 = vmatpush1.msra.mxu0 %v522
        %698 = vmatprep.subr.mxu0 0.0
        %699 = vmatpush1.msra.mxu0 %v523
        %700 = vmatprep.subr.mxu0 0.0
        %701 = vmatpush1.msra.mxu0 %v524
        %702 = vmatprep.subr.mxu0 0.0
        %703 = vmatpush1.msra.mxu0 %v525
        %704 = vmatprep.subr.mxu0 0.0
        %705 = vmatpush1.msra.mxu0 %v526
        %706 = vmatprep.subr.mxu0 0.0
        %707 = vmatpush1.msra.mxu0 %v527
        %708 = vmatprep.subr.mxu0 0.0
        %709 = vmatpush1.msra.mxu0 %v528
        %710 = vmatprep.subr.mxu0 0.0
        %711 = vmatpush1.msra.mxu0 %v529
        %712 = vmatprep.subr.mxu0 0.0
        %713 = vmatpush1.msra.mxu0 %v530
        %714 = vmatprep.subr.mxu0 0.0
        %715 = vmatpush1.msra.mxu0 %v531
        %716 = vmatprep.subr.mxu0 0.0
        %717 = vmatpush1.msra.mxu0 %v532
        %718 = vmatprep.subr.mxu0 0.0
        %719 = vmatpush1.msra.mxu0 %v533
        %720 = vmatprep.subr.mxu0 0.0
        %721 = vmatpush1.msra.mxu0 %v534
        %722 = vmatprep.subr.mxu0 0.0
        %723 = vmatpush1.msra.mxu0 %v535
        %724 = vmatprep.subr.mxu0 0.0
        %725 = vmatpush1.msra.mxu0 %v536
        %726 = vmatprep.subr.mxu0 0.0
        %727 = vmatpush1.msra.mxu0 %v537
        %728 = vmatprep.subr.mxu0 0.0
        %729 = vmatpush1.msra.mxu0 %v538
        %730 = vmatprep.subr.mxu0 0.0
        %731 = vmatpush1.msra.mxu0 %v539
        %732 = vmatprep.subr.mxu0 0.0
        %733 = vmatpush1.msra.mxu0 %v540
        %734 = vmatprep.subr.mxu0 0.0
        %735 = vmatpush1.msra.mxu0 %v541
        %736 = vmatprep.subr.mxu0 0.0
        %737 = vmatpush1.msra.mxu0 %v542
        %738 = vmatprep.subr.mxu0 0.0
        %739 = vmatpush1.msra.mxu0 %v543
        %740 = vmatprep.subr.mxu0 0.0
        %741 = vmatpush1.msra.mxu0 %v544
        %742 = vmatprep.subr.mxu0 0.0
        %743 = vmatpush1.msra.mxu0 %v545
        %744 = vmatprep.subr.mxu0 0.0
        %745 = vmatpush1.msra.mxu0 %v546
        %746 = vmatprep.subr.mxu0 0.0
        %747 = vmatpush1.msra.mxu0 %v547
        %748 = vmatprep.subr.mxu0 0.0
        %749 = vmatpush1.msra.mxu0 %v548
        %750 = vmatprep.subr.mxu0 0.0
        %751 = vmatpush1.msra.mxu0 %v549
        %752 = vmatprep.mubr.f32.mxu0 %v617
        %753 = vmatmul.mubr.f32.gmra.mrb[0].mxu0 %v616
        %v754 = vpop.f32.mrb[0].mxu0
        %v755 = vadd.f32 0.0, %v754
        %v756 = vpop.f32.mrb[0].mxu0
        %757 = vdwg.mxu0
        %758 = vmatprep.subr.mxu0 0.0
        %759 = vmatpush1.msra.mxu0 %v550
        %760 = vmatprep.subr.mxu0 0.0
        %761 = vmatpush1.msra.mxu0 %v551
        %762 = vmatprep.subr.mxu0 0.0
        %763 = vmatpush1.msra.mxu0 %v552
        %764 = vmatprep.subr.mxu0 0.0
        %765 = vmatpush1.msra.mxu0 %v553
        %766 = vmatprep.subr.mxu0 0.0
        %767 = vmatpush1.msra.mxu0 %v554
        %768 = vmatprep.subr.mxu0 0.0
        %769 = vmatpush1.msra.mxu0 %v555
        %770 = vmatprep.subr.mxu0 0.0
        %771 = vmatpush1.msra.mxu0 %v556
        %772 = vmatprep.subr.mxu0 0.0
        %773 = vmatpush1.msra.mxu0 %v557
        %774 = vmatprep.subr.mxu0 0.0
        %775 = vmatpush1.msra.mxu0 %v558
        %776 = vmatprep.subr.mxu0 0.0
        %777 = vmatpush1.msra.mxu0 %v559
        %778 = vmatprep.subr.mxu0 0.0
        %779 = vmatpush1.msra.mxu0 %v560
        %780 = vmatprep.subr.mxu0 0.0
        %781 = vmatpush1.msra.mxu0 %v561
        %782 = vmatprep.subr.mxu0 0.0
        %783 = vmatpush1.msra.mxu0 %v562
        %784 = vmatprep.subr.mxu0 0.0
        %785 = vmatpush1.msra.mxu0 %v563
        %786 = vmatprep.subr.mxu0 0.0
        %787 = vmatpush1.msra.mxu0 %v564
        %788 = vmatprep.subr.mxu0 0.0
        %789 = vmatpush1.msra.mxu0 %v565
        %790 = vmatprep.subr.mxu0 0.0
        %791 = vmatpush1.msra.mxu0 %v566
        %792 = vmatprep.subr.mxu0 0.0
        %793 = vmatpush1.msra.mxu0 %v567
        %794 = vmatprep.subr.mxu0 0.0
        %795 = vmatpush1.msra.mxu0 %v568
        %796 = vmatprep.subr.mxu0 0.0
        %797 = vmatpush1.msra.mxu0 %v569
        %798 = vmatprep.subr.mxu0 0.0
        %799 = vmatpush1.msra.mxu0 %v570
        %800 = vmatprep.subr.mxu0 0.0
        %801 = vmatpush1.msra.mxu0 %v571
        %802 = vmatprep.subr.mxu0 0.0
        %803 = vmatpush1.msra.mxu0 %v572
        %804 = vmatprep.subr.mxu0 0.0
        %805 = vmatpush1.msra.mxu0 %v573
        %806 = vmatprep.subr.mxu0 0.0
        %807 = vmatpush1.msra.mxu0 %v574
        %808 = vmatprep.subr.mxu0 0.0
        %809 = vmatpush1.msra.mxu0 %v575
        %810 = vmatprep.subr.mxu0 0.0
        %811 = vmatpush1.msra.mxu0 %v576
        %812 = vmatprep.subr.mxu0 0.0
        %813 = vmatpush1.msra.mxu0 %v577
        %814 = vmatprep.subr.mxu0 0.0
        %815 = vmatpush1.msra.mxu0 %v578
        %816 = vmatprep.subr.mxu0 0.0
        %817 = vmatpush1.msra.mxu0 %v579
        %818 = vmatprep.subr.mxu0 0.0
        %819 = vmatpush1.msra.mxu0 %v580
        %820 = vmatprep.subr.mxu0 0.0
        %821 = vmatpush1.msra.mxu0 %v581
        %822 = vmatprep.mubr.f32.mxu0 %v617
        %823 = vmatmul.mubr.f32.gmra.mrb[0].mxu0 %v616
        %v824 = vpop.f32.mrb[0].mxu0
        %v825 = vadd.f32 0.0, %v824
        %v826 = vpop.f32.mrb[0].mxu0
        %827 = vdwg.mxu0
        %v828 = vmul.f32 %v685, %v614
        %829 = vrot.lane.b32.xlu0 %v685, 64
        %v830 = vpop.permute.xlu0 %829
        %v831 = vmul.f32 %v830, %v615
        %v832 = vadd.f32 %v828, %v831
        %v833 = vmul.f32 %v755, %v614
        %834 = vrot.lane.b32.xlu0 %v755, 64
        %v835 = vpop.permute.xlu0 %834
        %v836 = vmul.f32 %v835, %v615
        %v837 = vadd.f32 %v833, %v836
        %838 = vmatprep.subr.mxu0 0.0
        %839 = vmatpush1.xpose.msra.mxu0 %v837
        %840 = vmatprep.subr.mxu0 0.0
        %841 = vmatpush1.xpose.msra.mxu0 0.0
        %842 = vmatprep.subr.mxu0 0.0
        %843 = vmatpush1.xpose.msra.mxu0 0.0
        %844 = vmatprep.subr.mxu0 0.0
        %845 = vmatpush1.xpose.msra.mxu0 0.0
        %846 = vmatprep.subr.mxu0 0.0
        %847 = vmatpush1.xpose.msra.mxu0 0.0
        %848 = vmatprep.subr.mxu0 0.0
        %849 = vmatpush1.xpose.msra.mxu0 0.0
        %850 = vmatprep.subr.mxu0 0.0
        %851 = vmatpush1.xpose.msra.mxu0 0.0
        %852 = vmatprep.subr.mxu0 0.0
        %853 = vmatpush1.xpose.msra.mxu0 0.0
        %854 = vmatprep.subr.mxu0 0.0
        %855 = vmatpush1.xpose.msra.mxu0 0.0
        %856 = vmatprep.subr.mxu0 0.0
        %857 = vmatpush1.xpose.msra.mxu0 0.0
        %858 = vmatprep.subr.mxu0 0.0
        %859 = vmatpush1.xpose.msra.mxu0 0.0
        %860 = vmatprep.subr.mxu0 0.0
        %861 = vmatpush1.xpose.msra.mxu0 0.0
        %862 = vmatprep.subr.mxu0 0.0
        %863 = vmatpush1.xpose.msra.mxu0 0.0
        %864 = vmatprep.subr.mxu0 0.0
        %865 = vmatpush1.xpose.msra.mxu0 0.0
        %866 = vmatprep.subr.mxu0 0.0
        %867 = vmatpush1.xpose.msra.mxu0 0.0
        %868 = vmatprep.subr.mxu0 0.0
        %869 = vmatpush1.xpose.msra.mxu0 0.0
        %870 = vmatprep.subr.mxu0 0.0
        %871 = vmatpush1.xpose.msra.mxu0 0.0
        %872 = vmatprep.subr.mxu0 0.0
        %873 = vmatpush1.xpose.msra.mxu0 0.0
        %874 = vmatprep.subr.mxu0 0.0
        %875 = vmatpush1.xpose.msra.mxu0 0.0
        %876 = vmatprep.subr.mxu0 0.0
        %877 = vmatpush1.xpose.msra.mxu0 0.0
        %878 = vmatprep.subr.mxu0 0.0
        %879 = vmatpush1.xpose.msra.mxu0 0.0
        %880 = vmatprep.subr.mxu0 0.0
        %881 = vmatpush1.xpose.msra.mxu0 0.0
        %882 = vmatprep.subr.mxu0 0.0
        %883 = vmatpush1.xpose.msra.mxu0 0.0
        %884 = vmatprep.subr.mxu0 0.0
        %885 = vmatpush1.xpose.msra.mxu0 0.0
        %886 = vmatprep.subr.mxu0 0.0
        %887 = vmatpush1.xpose.msra.mxu0 0.0
        %888 = vmatprep.subr.mxu0 0.0
        %889 = vmatpush1.xpose.msra.mxu0 0.0
        %890 = vmatprep.subr.mxu0 0.0
        %891 = vmatpush1.xpose.msra.mxu0 0.0
        %892 = vmatprep.subr.mxu0 0.0
        %893 = vmatpush1.xpose.msra.mxu0 0.0
        %894 = vmatprep.subr.mxu0 0.0
        %895 = vmatpush1.xpose.msra.mxu0 0.0
        %896 = vmatprep.subr.mxu0 0.0
        %897 = vmatpush1.xpose.msra.mxu0 0.0
        %898 = vmatprep.subr.mxu0 0.0
        %899 = vmatpush1.xpose.msra.mxu0 0.0
        %900 = vmatprep.subr.mxu0 0.0
        %901 = vmatpush1.xpose.msra.mxu0 0.0
        %902 = vmatprep.mubr.f32.mxu0 0.0
        %903 = vmatmul.mubr.f32.gmra.mrb[0].mxu0 %v832
        %v904 = vpop.f32.mrb[0].mxu0
        %v905 = vadd.f32 0.0, %v904
        %v906 = vpop.f32.mrb[0].mxu0
        %907 = vdwg.mxu0
        %vm908 = vcmask 64512
        %v909 = vsel %vm908, %v905, -inf
        %910 = vmax.xlane.f32.xlu0 %v909
        %v911 = vpop.xlane.xlu0 %910
        %v912 = vsub.f32 %v905, %v911
        %v913 = vmul.f32 %v912, 1.442695
        %v914 = vpow.pop %v913
        %v915 = vsel %vm908, %v914, 0.0
        %916 = vadd.xlane.f32.xlu0 %v915
        %v917 = vpop.xlane.xlu0 %916
        %v918 = vrcp.pop %v917
        %v919 = vmul.f32 %v914, %v918
        %v921 = vsel %vm908, %v919, 0
        %923 = vmatprep.subr.mxu0 0.0
        %924 = vmatpush1.msra.mxu0 %v825
        %925 = vmatprep.subr.mxu0 0.0
        %926 = vmatpush1.msra.mxu0 0.0
        %927 = vmatprep.subr.mxu0 0.0
        %928 = vmatpush1.msra.mxu0 0.0
        %929 = vmatprep.subr.mxu0 0.0
        %930 = vmatpush1.msra.mxu0 0.0
        %931 = vmatprep.subr.mxu0 0.0
        %932 = vmatpush1.msra.mxu0 0.0
        %933 = vmatprep.subr.mxu0 0.0
        %934 = vmatpush1.msra.mxu0 0.0
        %935 = vmatprep.subr.mxu0 0.0
        %936 = vmatpush1.msra.mxu0 0.0
        %937 = vmatprep.subr.mxu0 0.0
        %938 = vmatpush1.msra.mxu0 0.0
        %939 = vmatprep.subr.mxu0 0.0
        %940 = vmatpush1.msra.mxu0 0.0
        %941 = vmatprep.subr.mxu0 0.0
        %942 = vmatpush1.msra.mxu0 0.0
        %943 = vmatprep.subr.mxu0 0.0
        %944 = vmatpush1.msra.mxu0 0.0
        %945 = vmatprep.subr.mxu0 0.0
        %946 = vmatpush1.msra.mxu0 0.0
        %947 = vmatprep.subr.mxu0 0.0
        %948 = vmatpush1.msra.mxu0 0.0
        %949 = vmatprep.subr.mxu0 0.0
        %950 = vmatpush1.msra.mxu0 0.0
        %951 = vmatprep.subr.mxu0 0.0
        %952 = vmatpush1.msra.mxu0 0.0
        %953 = vmatprep.subr.mxu0 0.0
        %954 = vmatpush1.msra.mxu0 0.0
        %955 = vmatprep.subr.mxu0 0.0
        %956 = vmatpush1.msra.mxu0 0.0
        %957 = vmatprep.subr.mxu0 0.0
        %958 = vmatpush1.msra.mxu0 0.0
        %959 = vmatprep.subr.mxu0 0.0
        %960 = vmatpush1.msra.mxu0 0.0
        %961 = vmatprep.subr.mxu0 0.0
        %962 = vmatpush1.msra.mxu0 0.0
        %963 = vmatprep.subr.mxu0 0.0
        %964 = vmatpush1.msra.mxu0 0.0
        %965 = vmatprep.subr.mxu0 0.0
        %966 = vmatpush1.msra.mxu0 0.0
        %967 = vmatprep.subr.mxu0 0.0
        %968 = vmatpush1.msra.mxu0 0.0
        %969 = vmatprep.subr.mxu0 0.0
        %970 = vmatpush1.msra.mxu0 0.0
        %971 = vmatprep.subr.mxu0 0.0
        %972 = vmatpush1.msra.mxu0 0.0
        %973 = vmatprep.subr.mxu0 0.0
        %974 = vmatpush1.msra.mxu0 0.0
        %975 = vmatprep.subr.mxu0 0.0
        %976 = vmatpush1.msra.mxu0 0.0
        %977 = vmatprep.subr.mxu0 0.0
        %978 = vmatpush1.msra.mxu0 0.0
        %979 = vmatprep.subr.mxu0 0.0
        %980 = vmatpush1.msra.mxu0 0.0
        %981 = vmatprep.subr.mxu0 0.0
        %982 = vmatpush1.msra.mxu0 0.0
        %983 = vmatprep.subr.mxu0 0.0
        %984 = vmatpush1.msra.mxu0 0.0
        %985 = vmatprep.subr.mxu0 0.0
        %986 = vmatpush1.msra.mxu0 0.0
        %987 = vmatprep.mubr.f32.mxu0 0.0
        %988 = vmatmul.mubr.f32.gmra.mrb[0].mxu0 %v921
        %v989 = vpop.f32.mrb[0].mxu0
        %v990 = vadd.f32 0.0, %v989
        %v991 = vpop.f32.mrb[0].mxu0
        %992 = vdwg.mxu0
        %993 = vmatprep.subr.mxu0 %v583
        %994 = vmatpush1.msra.mxu0 %v582
        %995 = vmatprep.subr.mxu0 %v585
        %996 = vmatpush1.msra.mxu0 %v584
        %997 = vmatprep.subr.mxu0 %v587
        %998 = vmatpush1.msra.mxu0 %v586
        %999 = vmatprep.subr.mxu0 %v589
        %1000 = vmatpush1.msra.mxu0 %v588
        %1001 = vmatprep.subr.mxu0 %v591
        %1002 = vmatpush1.msra.mxu0 %v590
        %1003 = vmatprep.subr.mxu0 %v593
        %1004 = vmatpush1.msra.mxu0 %v592
        %1005 = vmatprep.subr.mxu0 %v595
        %1006 = vmatpush1.msra.mxu0 %v594
        %1007 = vmatprep.subr.mxu0 %v597
        %1008 = vmatpush1.msra.mxu0 %v596
        %1009 = vmatprep.subr.mxu0 %v599
        %1010 = vmatpush1.msra.mxu0 %v598
        %1011 = vmatprep.subr.mxu0 %v601
        %1012 = vmatpush1.msra.mxu0 %v600
        %1013 = vmatprep.subr.mxu0 %v603
        %1014 = vmatpush1.msra.mxu0 %v602
        %1015 = vmatprep.subr.mxu0 %v605
        %1016 = vmatpush1.msra.mxu0 %v604
        %1017 = vmatprep.subr.mxu0 %v607
        %1018 = vmatpush1.msra.mxu0 %v606
        %1019 = vmatprep.subr.mxu0 %v609
        %1020 = vmatpush1.msra.mxu0 %v608
        %1021 = vmatprep.subr.mxu0 %v611
        %1022 = vmatpush1.msra.mxu0 %v610
        %1023 = vmatprep.subr.mxu0 %v613
        %1024 = vmatpush1.msra.mxu0 %v612
        %1025 = vmatprep.subr.mxu0 0.0
        %1026 = vmatpush1.msra.mxu0 0.0
        %1027 = vmatprep.subr.mxu0 0.0
        %1028 = vmatpush1.msra.mxu0 0.0
        %1029 = vmatprep.subr.mxu0 0.0
        %1030 = vmatpush1.msra.mxu0 0.0
        %1031 = vmatprep.subr.mxu0 0.0
        %1032 = vmatpush1.msra.mxu0 0.0
        %1033 = vmatprep.subr.mxu0 0.0
        %1034 = vmatpush1.msra.mxu0 0.0
        %1035 = vmatprep.subr.mxu0 0.0
        %1036 = vmatpush1.msra.mxu0 0.0
        %1037 = vmatprep.subr.mxu0 0.0
        %1038 = vmatpush1.msra.mxu0 0.0
        %1039 = vmatprep.subr.mxu0 0.0
        %1040 = vmatpush1.msra.mxu0 0.0
        %1041 = vmatprep.subr.mxu0 0.0
        %1042 = vmatpush1.msra.mxu0 0.0
        %1043 = vmatprep.subr.mxu0 0.0
        %1044 = vmatpush1.msra.mxu0 0.0
        %1045 = vmatprep.subr.mxu0 0.0
        %1046 = vmatpush1.msra.mxu0 0.0
        %1047 = vmatprep.subr.mxu0 0.0
        %1048 = vmatpush1.msra.mxu0 0.0
        %1049 = vmatprep.subr.mxu0 0.0
        %1050 = vmatpush1.msra.mxu0 0.0
        %1051 = vmatprep.subr.mxu0 0.0
        %1052 = vmatpush1.msra.mxu0 0.0
        %1053 = vmatprep.subr.mxu0 0.0
        %1054 = vmatpush1.msra.mxu0 0.0
        %1055 = vmatprep.subr.mxu0 0.0
        %1056 = vmatpush1.msra.mxu0 0.0
        %1057 = vmatprep.mubr.f32.mxu0 0.0
        %1058 = vmatmul.mubr.f32.gmra.mrb[0].mxu0 %v990
        %v1059 = vpop.f32.mrb[0].mxu0
        %v1060 = vadd.f32 0.0, %v1059
        %v1061 = vpop.f32.mrb[0].mxu0
        %v1062 = vadd.f32 0.0, %v1061
        %1063 = vdwg.mxu0
        %p1064 = scmp.eq.s32.totalorder %s36, 0
        // Predicated region
        $region77: #{tpu_custom_call.1} parent=47 // pred_check
          %p1065 = pneg %p1064
        $region78: #{tpu_custom_call.1} parent=47 // pred_check_branch
          %1067 = sbr.rel (%p1065) target = $region80
        $region79: #{tpu_custom_call.1} parent=47 // pred_region
          %1068 = vst [vmem:[#allocation2] sm:$0xff] %v1060
          %1069 = vst [vmem:[#allocation2 + $0x8] sm:$0xff] %v1062
        $region80: #{tpu_custom_call.1} parent=47 // pred_fallthru
          _
        %p1070 = scmp.gt.s32.totalorder %s36, 0
        // Predicated region
        $region81: #{tpu_custom_call.1} parent=47 // pred_check
          %p1071 = pneg %p1070
        $region82: #{tpu_custom_call.1} parent=47 // pred_check_branch
          %1073 = sbr.rel (%p1071) target = $region84
        $region83: #{tpu_custom_call.1} parent=47 // pred_region
          %v1074 = vld [vmem:[#allocation2] sm:$0xff]
          %v1075 = vld [vmem:[#allocation2 + $0x8] sm:$0xff]
          %v1076 = vadd.f32 %v1074, %v1060
          %v1077 = vadd.f32 %v1075, %v1062
          %1078 = vst [vmem:[#allocation2] sm:$0xff] %v1076
          %1079 = vst [vmem:[#allocation2 + $0x8] sm:$0xff] %v1077
        $region84: #{tpu_custom_call.1} parent=47 // pred_fallthru
          _
        %p1080 = scmp.eq.s32.totalorder %s36, 1
        // Predicated region
        $region85: #{tpu_custom_call.1} parent=47 // pred_check
          %p1081 = pneg %p1080
        $region86: #{tpu_custom_call.1} parent=47 // pred_check_branch
          %1083 = sbr.rel (%p1081) target = $region88
        $region87: #{tpu_custom_call.1} parent=47 // pred_region
          %v1084 = vld [vmem:[#allocation2] sm:$0xff]
          %v1085 = vld [vmem:[#allocation2 + $0x8] sm:$0xff]
          %1086 = vst [vmem:[%s485] sm:$0xff] %v1084
          %1087 = vst [vmem:[%s485 + $0x8] sm:$0xff] %v1085
        $region88: #{tpu_custom_call.1} parent=47 // pred_fallthru
          _
        %s1088 = sand.u32 %s223, 1
        %s1089 = scalar_lea.sflag [#allocation5], %s1088
        %s1090 = sand.u32 %s223, 1
        %s1091 = smul.addr %s1090, 16
        %s1092 = scalar_lea.vmem [#allocation15], %s1091
        // Predicated region
        $region89: #{tpu_custom_call.1} parent=47 // pred_check
          %p1093 = pneg %p233
        $region90: #{tpu_custom_call.1} parent=47 // pred_check_branch
          %1095 = sbr.rel (%p1093) target = $region92
        $region91: #{tpu_custom_call.1} parent=47 // pred_region
          %s1097 = ssub.s32 256, 256
          %1098 = vsyncadd %s1089, %s1097
          %s1099 = smul.addr %s35, 2
          %s1100 = smul.addr %s1099, 128
          %s1101 = scalar_lea.hbm %s7, %s1100
          %s1103 = sshll.u32 %s1092, 4
          %s1104 = int_to_ptr.vmem [resolvable:$true] %s1103
          %1106 = dma.vmem_to_hbm [thread:$0]  %s1104, 256, %s1101, %s1089
        $region92: #{tpu_custom_call.1} parent=47 // pred_fallthru
          _
      $region48: #{tpu_custom_call.1} parent=5 // pred_fallthru
        _
      %p1107 = scmp.le.s32.totalorder 2, %s26
      // Predicated region
      $region93: #{tpu_custom_call.1} parent=5 // pred_check
        %p1108 = pneg %p1107
      $region94: #{tpu_custom_call.1} parent=5 // pred_check_branch
        %1110 = sbr.rel (%p1108) target = $region96
      $region95: #{tpu_custom_call.1} parent=5 // pred_region
        %s1111 = ssub.s32 %s26, 2
        // Predicated region
        $region97: #{tpu_custom_call.1} parent=95 // pred_check
          %p1112 = pneg %p239
        $region98: #{tpu_custom_call.1} parent=95 // pred_check_branch
          %1114 = sbr.rel (%p1112) target = $region100
        $region99: #{tpu_custom_call.1} parent=95 // pred_region
          %s1115 = sand.u32 %s224, 1
          %s1116 = scalar_lea.sflag [#allocation5], %s1115
          %s1117 = sand.u32 %s224, 1
          %s1118 = smul.addr %s1117, 16
          %s1119 = scalar_lea.vmem [#allocation15], %s1118
          %1120 = dma.done %s1116, 256
        $region100: #{tpu_custom_call.1} parent=95 // pred_fallthru
          _
      $region96: #{tpu_custom_call.1} parent=5 // pred_fallthru
        _
    $region6: #{tpu_custom_call.1} parent=1 // loop_footer
      %s30 = sadd.s32 1, %s26
    $region7: #{tpu_custom_call.1} parent=1 // loop_footer_branch
      %25 = sbr.rel target = $region3
    $region8: #{tpu_custom_call.1} parent=1 // loop_exit
      _
    %1121 = vsyncpa [#allocation4], 1
    %s1122 = scalar_lea.sflag [#allocation4], 1
    %1123 = vsyncpa %s1122, 1
    %1124 = vsyncpa [#allocation7], 1
    %s1125 = scalar_lea.sflag [#allocation7], 1
    %1126 = vsyncpa %s1125, 1
    %1127 = vsyncpa [#allocation10], 1
    %s1128 = scalar_lea.sflag [#allocation10], 1
    %1129 = vsyncpa %s1128, 1
    %1130 = vsyncpa [#allocation13], 1
    %1131 = vsyncpa [#allocation5], 1
    %s1132 = scalar_lea.sflag [#allocation5], 1
    %1133 = vsyncpa %s1132, 1

</llo_original>
